<compile_context>
chip_gen: v5e
topology: v5e:2x2
jax: 0.10.0
libtpu: 0.0.40
codegen_flags: <defaults>
</compile_context>

<pallas_src>
import functools

import numpy as np
import jax
import jax.numpy as jnp
from jax.experimental import pallas as pl
from jax.experimental.pallas import tpu as pltpu

# --- config (SmallTransformerLM defaults with a small vocab) ---
VOCAB = 16
D_MODEL = 128
N_HEADS = 4
NUM_LAYERS = 2
MAX_LEN = 10
D_FF = D_MODEL * 4
HEAD_DIM = D_MODEL // N_HEADS
LN_EPS = 1e-5          # PyTorch layer_norm_eps default
V_PAD = 128            # lane-dense LM-head width (>= VOCAB)


def _layernorm(x, w, b):
    mu = jnp.mean(x, axis=-1, keepdims=True)
    var = jnp.mean((x - mu) ** 2, axis=-1, keepdims=True)
    return (x - mu) * jax.lax.rsqrt(var + LN_EPS) * w + b


def _make_kernel(b_blk, s_pad):
    n = b_blk * s_pad          # total rows (batch folded into sublanes)
    hn = N_HEADS * n

    def kernel(x_ref, attn_bias_ref, head_mask_ref, seg_lanes_ref,
               w_qkv_ref, b_qkv_ref, w_o_ref, b_o_ref,
               ln1w_ref, ln1b_ref, w1_ref, b1_ref, w2_ref, b2_ref,
               ln2w_ref, ln2b_ref,
               lm_w_ref, lm_b_ref,
               out_ref, h_scr):
        layer = pl.program_id(0)

        @pl.when(layer == 0)
        def _():
            h_scr[...] = x_ref[...].reshape(n, D_MODEL)

        h = h_scr[...]                                          # (N, D) f32
        h_bf = h.astype(jnp.bfloat16)

        # ---- fused multi-head self-attention (eval-mode dropout) ----
        # 1/sqrt(head_dim) is pre-folded into the Q columns of w_qkv / b_qkv.
        qkv = jnp.dot(h_bf, w_qkv_ref[0],
                      preferred_element_type=jnp.float32) + b_qkv_ref[0]
        q = qkv[:, :D_MODEL]
        k = qkv[:, D_MODEL:2 * D_MODEL]
        v = qkv[:, 2 * D_MODEL:]

        # replicate K/V once per head, zeroing lanes outside that head
        hm = head_mask_ref[...]                                 # (H, 1, D) f32
        k_big = (hm * k.reshape(1, n, D_MODEL)).reshape(hn, D_MODEL)
        v_big = (hm * v.reshape(1, n, D_MODEL)).reshape(hn, D_MODEL)
        k_big = k_big.astype(jnp.bfloat16)
        v_big = v_big.astype(jnp.bfloat16)

        # one matmul computes every head's scores: (N, H*N)
        sc = jax.lax.dot_general(
            q.astype(jnp.bfloat16), k_big,
            (((1,), (1,)), ((), ())),
            preferred_element_type=jnp.float32)
        sc = sc + attn_bias_ref[...]
        sc = sc - jnp.max(sc, axis=-1, keepdims=True)           # per-row const
        e_bf = jnp.exp(sc).astype(jnp.bfloat16)                 # masked -> 0

        # one matmul applies every head's (unnormalized) probabilities; the
        # lane masking in v_big drops each head's context into its own 32-lane
        # slot.  The per-head denominator is a second bf16 one-hot matmul that
        # broadcasts each head's sum over that head's lanes.
        ctx = jnp.dot(e_bf, v_big, preferred_element_type=jnp.float32)
        denom = jnp.dot(e_bf, seg_lanes_ref[...],
                        preferred_element_type=jnp.float32)      # (N, D)
        # floor guards against a head whose scores sit far below the global
        # per-row max underflowing to denom == 0.
        ctx = ctx * pl.reciprocal(jnp.maximum(denom, 1e-20), approx=True)

        attn = jnp.dot(ctx.astype(jnp.bfloat16), w_o_ref[0],
                       preferred_element_type=jnp.float32) + b_o_ref[0]

        # post-LN residual 1 (PyTorch norm_first=False)
        h = _layernorm(h + attn, ln1w_ref[0], ln1b_ref[0])

        # ---- feed-forward (relu) ----
        h_bf = h.astype(jnp.bfloat16)
        ff = jnp.dot(h_bf, w1_ref[0],
                     preferred_element_type=jnp.float32) + b1_ref[0]
        ff = jnp.maximum(ff, 0.0)
        ff = jnp.dot(ff.astype(jnp.bfloat16), w2_ref[0],
                     preferred_element_type=jnp.float32) + b2_ref[0]

        # post-LN residual 2
        h = _layernorm(h + ff, ln2w_ref[0], ln2b_ref[0])
        h_scr[...] = h

        # ---- LM head (lane-dense, zero-padded to V_PAD columns) ----
        @pl.when(layer == NUM_LAYERS - 1)
        def _():
            logits = jnp.dot(h.astype(jnp.bfloat16), lm_w_ref[...],
                             preferred_element_type=jnp.float32) + lm_b_ref[...]
            out_ref[...] = logits.reshape(b_blk, s_pad, V_PAD)

    return kernel


@functools.lru_cache(maxsize=None)
def _attention_constants(b, s, s_pad):
    """Tiny precomputed masks (built once in numpy, cached per shape)."""
    n = b * s_pad
    hn = N_HEADS * n

    # additive bias on the fused (N, H*N) score matrix: column c encodes
    # (head = c // N, key row m = c % N); valid iff same batch element and
    # not a padded sequence position.
    q_row = np.arange(n)[:, None]
    col = np.arange(hn)[None, :]
    k_row = col % n
    valid = (k_row // s_pad == q_row // s_pad) & (k_row % s_pad < s)
    attn_bias = np.where(valid, 0.0, -1e30).astype(np.float32)

    # per-head lane mask: head_mask[h, 0, d] = 1 iff lane d belongs to head h
    head = np.arange(N_HEADS)[:, None, None]
    lane = np.arange(D_MODEL)[None, None, :]
    head_mask = (lane // HEAD_DIM == head).astype(np.float32)       # (H, 1, D)

    # one-hot segment matrix broadcasting each head's denominator into that
    # head's 32-lane slot: seg_lanes[c, d] = 1 iff (c // n) == (d // HEAD_DIM)
    c = np.arange(hn)[:, None]
    d = np.arange(D_MODEL)[None, :]
    seg_lanes = ((c // n) == (d // HEAD_DIM)).astype(np.float32)     # (hn, D)

    return (jnp.asarray(attn_bias),
            jnp.asarray(head_mask),
            jnp.asarray(seg_lanes, dtype=jnp.bfloat16))


def init_params(key):
    """Parameters in the PyTorch layouts (Linear weights are (out, in))."""
    ks = jax.random.split(key, 11)

    def nrm(k, shape, s=0.02):
        return jax.random.normal(k, shape, jnp.float32) * s

    return dict(
        token_emb=nrm(ks[0], (VOCAB, D_MODEL)),
        pos_emb=nrm(ks[1], (MAX_LEN, D_MODEL)),
        w_qkv=nrm(ks[2], (NUM_LAYERS, 3 * D_MODEL, D_MODEL)),
        b_qkv=nrm(ks[3], (NUM_LAYERS, 1, 3 * D_MODEL)),
        w_o=nrm(ks[4], (NUM_LAYERS, D_MODEL, D_MODEL)),
        b_o=nrm(ks[5], (NUM_LAYERS, 1, D_MODEL)),
        ln1_w=jnp.ones((NUM_LAYERS, 1, D_MODEL), jnp.float32),
        ln1_b=jnp.zeros((NUM_LAYERS, 1, D_MODEL), jnp.float32),
        w1=nrm(ks[6], (NUM_LAYERS, D_FF, D_MODEL)),
        b1=nrm(ks[7], (NUM_LAYERS, 1, D_FF)),
        w2=nrm(ks[8], (NUM_LAYERS, D_MODEL, D_FF)),
        b2=nrm(ks[9], (NUM_LAYERS, 1, D_MODEL)),
        ln2_w=jnp.ones((NUM_LAYERS, 1, D_MODEL), jnp.float32),
        ln2_b=jnp.zeros((NUM_LAYERS, 1, D_MODEL), jnp.float32),
        lm_w=nrm(ks[10], (VOCAB, D_MODEL)),
        lm_b=jnp.zeros((1, VOCAB), jnp.float32),
    )


def prepare_params(params):
    """One-time repack of PyTorch-layout params into kernel-ready arrays.

    Runs once at init (not per forward call): transposes Linear weights to
    (in, out), casts matmul weights to bf16, folds 1/sqrt(head_dim) into the
    Q columns of w_qkv/b_qkv, and zero-pads the LM head to V_PAD lanes.
    """
    scale = 1.0 / (HEAD_DIM ** 0.5)

    w_qkv = jnp.swapaxes(params["w_qkv"], -1, -2)            # (L, D, 3D) f32
    w_qkv = w_qkv.at[:, :, :D_MODEL].multiply(scale)         # fold scale into Q
    b_qkv = params["b_qkv"].at[:, :, :D_MODEL].multiply(scale)

    lm_w = jnp.zeros((D_MODEL, V_PAD), jnp.float32)
    lm_w = lm_w.at[:, :VOCAB].set(params["lm_w"].T)
    lm_b = jnp.zeros((1, V_PAD), jnp.float32)
    lm_b = lm_b.at[:, :VOCAB].set(params["lm_b"].reshape(1, VOCAB))

    prep = dict(
        token_emb=params["token_emb"],
        pos_emb=params["pos_emb"],
        w_qkv=w_qkv.astype(jnp.bfloat16),
        b_qkv=b_qkv,
        w_o=jnp.swapaxes(params["w_o"], -1, -2).astype(jnp.bfloat16),
        b_o=params["b_o"],
        ln1_w=params["ln1_w"], ln1_b=params["ln1_b"],
        w1=jnp.swapaxes(params["w1"], -1, -2).astype(jnp.bfloat16),
        b1=params["b1"],
        w2=jnp.swapaxes(params["w2"], -1, -2).astype(jnp.bfloat16),
        b2=params["b2"],
        ln2_w=params["ln2_w"], ln2_b=params["ln2_b"],
        lm_w=lm_w.astype(jnp.bfloat16),
        lm_b=lm_b,
    )
    return jax.block_until_ready(prep)


def small_transformer_lm_forward(tokens, prep):
    """tokens: (B, S) int32, prep = prepare_params(...) -> logits (B, S, VOCAB)."""
    B, S = tokens.shape
    assert S <= MAX_LEN
    S_pad = ((S + 7) // 8) * 8          # sublane multiple
    n = B * S_pad

    attn_bias, head_mask, seg_lanes = _attention_constants(B, S, S_pad)

    # glue: nn.Embedding lookups + positional add (+ zero pad rows to S_pad).
    # TODO(synk): optionally fold this gather/add into the kernel via scalar
    # prefetch + a one-hot matmul to remove the last couple of wrapper XLA ops.
    emb = prep["token_emb"][tokens] + prep["pos_emb"][jnp.arange(S)][None, :, :]
    emb = emb.astype(jnp.float32)
    if S_pad != S:
        emb = jnp.pad(emb, ((0, 0), (0, S_pad - S), (0, 0)))

    def const_spec(a):
        zeros = (0,) * a.ndim
        return pl.BlockSpec(a.shape, lambda l, _z=zeros: _z)

    def layer_spec(a):
        rest = tuple(a.shape[1:])
        zeros = (0,) * len(rest)
        return pl.BlockSpec((1,) + rest, lambda l, _z=zeros: (l,) + _z)

    const_inputs = [attn_bias, head_mask, seg_lanes]
    layer_weights = [prep["w_qkv"], prep["b_qkv"], prep["w_o"], prep["b_o"],
                     prep["ln1_w"], prep["ln1_b"],
                     prep["w1"], prep["b1"], prep["w2"], prep["b2"],
                     prep["ln2_w"], prep["ln2_b"]]
    head_weights = [prep["lm_w"], prep["lm_b"]]

    in_specs = ([pl.BlockSpec((B, S_pad, D_MODEL), lambda l: (0, 0, 0))]
                + [const_spec(a) for a in const_inputs]
                + [layer_spec(a) for a in layer_weights]
                + [const_spec(a) for a in head_weights])
    out_spec = pl.BlockSpec((B, S_pad, V_PAD), lambda l: (0, 0, 0))

    kernel = _make_kernel(B, S_pad)

    # Layers as grid steps: Pallas double-buffers the per-layer weight DMAs so
    # layer l+1's weights stream from HBM while layer l computes.  The residual
    # lives in a VMEM scratch across steps; constants/LM head use a fixed block
    # index and are fetched once.
    logits = pl.pallas_call(
        kernel,
        out_shape=jax.ShapeDtypeStruct((B, S_pad, V_PAD), jnp.float32),
        grid=(NUM_LAYERS,),
        in_specs=in_specs,
        out_specs=out_spec,
        scratch_shapes=[pltpu.VMEM((n, D_MODEL), jnp.float32)],
        compiler_params=pltpu.CompilerParams(
            dimension_semantics=("arbitrary",)),
    )(emb, *const_inputs, *layer_weights, *head_weights)

    # slice padded rows / padded logit columns back off
    return logits[:, :S, :VOCAB]


if __name__ == "__main__":
    key = jax.random.PRNGKey(0)
    pkey, tkey = jax.random.split(key)
    params = init_params(pkey)
    prep = prepare_params(params)       # one-time weight repack (not per call)

    B, S = 2, 8
    tokens = jax.random.randint(tkey, (B, S), 0, VOCAB, dtype=jnp.int32)

    fwd = jax.jit(small_transformer_lm_forward)
    logits = jax.block_until_ready(fwd(tokens, prep))

    assert logits.shape == (B, S, VOCAB), logits.shape
    assert bool(jnp.all(jnp.isfinite(logits)))
    print("KERNEL_OK")
</pallas_src>

<mosaic_0001>
module attributes {stable_mosaic.version = 11 : i64} {
  func.func @kernel(%arg0: i32, %arg1: memref<2x8x128xf32, #tpu.memory_space<vmem>>, %arg2: memref<16x64xf32, #tpu.memory_space<vmem>>, %arg3: memref<4x1x128xf32, #tpu.memory_space<vmem>>, %arg4: memref<64x128xbf16, #tpu.memory_space<vmem>>, %arg5: memref<1x128x384xbf16, #tpu.memory_space<vmem>>, %arg6: memref<1x1x384xf32, #tpu.memory_space<vmem>>, %arg7: memref<1x128x128xbf16, #tpu.memory_space<vmem>>, %arg8: memref<1x1x128xf32, #tpu.memory_space<vmem>>, %arg9: memref<1x1x128xf32, #tpu.memory_space<vmem>>, %arg10: memref<1x1x128xf32, #tpu.memory_space<vmem>>, %arg11: memref<1x128x512xbf16, #tpu.memory_space<vmem>>, %arg12: memref<1x1x512xf32, #tpu.memory_space<vmem>>, %arg13: memref<1x512x128xbf16, #tpu.memory_space<vmem>>, %arg14: memref<1x1x128xf32, #tpu.memory_space<vmem>>, %arg15: memref<1x1x128xf32, #tpu.memory_space<vmem>>, %arg16: memref<1x1x128xf32, #tpu.memory_space<vmem>>, %arg17: memref<128x128xbf16, #tpu.memory_space<vmem>>, %arg18: memref<1x128xf32, #tpu.memory_space<vmem>>, %arg19: memref<2x8x128xf32, #tpu.memory_space<vmem>>, %arg20: memref<16x128xf32, #tpu.memory_space<vmem>>) attributes {dimension_semantics = [#tpu.dimension_semantics<arbitrary>], iteration_bounds = array<i64: 2>, scalar_prefetch = 0 : i64, scratch_operands = 1 : i64, tpu.core_type = #tpu.core_type<tc>, window_params = [{pipeline_mode = #tpu.pipeline_mode<synchronous>, transform_indices = @transform_0, window_bounds = array<i64: 2, 8, 128>}, {pipeline_mode = #tpu.pipeline_mode<synchronous>, transform_indices = @transform_1, window_bounds = array<i64: 16, 64>}, {pipeline_mode = #tpu.pipeline_mode<synchronous>, transform_indices = @transform_2, window_bounds = array<i64: 4, 1, 128>}, {pipeline_mode = #tpu.pipeline_mode<synchronous>, transform_indices = @transform_3, window_bounds = array<i64: 64, 128>}, {transform_indices = @transform_4, window_bounds = array<i64: 1, 128, 384>}, {transform_indices = @transform_5, window_bounds = array<i64: 1, 1, 384>}, {transform_indices = @transform_6, window_bounds = array<i64: 1, 128, 128>}, {transform_indices = @transform_7, window_bounds = array<i64: 1, 1, 128>}, {transform_indices = @transform_8, window_bounds = array<i64: 1, 1, 128>}, {transform_indices = @transform_9, window_bounds = array<i64: 1, 1, 128>}, {transform_indices = @transform_10, window_bounds = array<i64: 1, 128, 512>}, {transform_indices = @transform_11, window_bounds = array<i64: 1, 1, 512>}, {transform_indices = @transform_12, window_bounds = array<i64: 1, 512, 128>}, {transform_indices = @transform_13, window_bounds = array<i64: 1, 1, 128>}, {transform_indices = @transform_14, window_bounds = array<i64: 1, 1, 128>}, {transform_indices = @transform_15, window_bounds = array<i64: 1, 1, 128>}, {pipeline_mode = #tpu.pipeline_mode<synchronous>, transform_indices = @transform_16, window_bounds = array<i64: 128, 128>}, {pipeline_mode = #tpu.pipeline_mode<synchronous>, transform_indices = @transform_17, window_bounds = array<i64: 1, 128>}, {pipeline_mode = #tpu.pipeline_mode<synchronous>, transform_indices = @transform_18, window_bounds = array<i64: 2, 8, 128>}]} {
    %c0_i32 = arith.constant 0 : i32
    %0 = arith.cmpi eq, %arg0, %c0_i32 : i32
    %1 = arith.extui %0 : i1 to i32
    %c0_i32_0 = arith.constant 0 : i32
    %2 = arith.cmpi ne, %1, %c0_i32_0 : i32
    scf.if %2 {
      %c0_67 = arith.constant 0 : index
      %c0_68 = arith.constant 0 : index
      %c0_69 = arith.constant 0 : index
      %129 = vector.load %arg1[%c0_67, %c0_68, %c0_69] : memref<2x8x128xf32, #tpu.memory_space<vmem>>, vector<2x8x128xf32>
      %130 = vector.shape_cast %129 : vector<2x8x128xf32> to vector<16x128xf32>
      %c0_70 = arith.constant 0 : index
      %c0_71 = arith.constant 0 : index
      %131 = vector.load %arg20[%c0_70, %c0_71] : memref<16x128xf32, #tpu.memory_space<vmem>>, vector<16x128xf32>
      tpu.vector_store %arg20[%c0_70, %c0_71], %130 {strides = array<i32>} : memref<16x128xf32, #tpu.memory_space<vmem>>, vector<16x128xf32>,
    } else {
    }
    %c0 = arith.constant 0 : index
    %c0_1 = arith.constant 0 : index
    %3 = vector.load %arg20[%c0, %c0_1] : memref<16x128xf32, #tpu.memory_space<vmem>>, vector<16x128xf32>
    %4 = arith.truncf %3 : vector<16x128xf32> to vector<16x128xbf16>
    %c0_2 = arith.constant 0 : index
    %c0_3 = arith.constant 0 : index
    %c0_4 = arith.constant 0 : index
    %5 = vector.load %arg5[%c0_2, %c0_3, %c0_4] : memref<1x128x384xbf16, #tpu.memory_space<vmem>>, vector<1x128x384xbf16>
    %6 = vector.shape_cast %5 : vector<1x128x384xbf16> to vector<128x384xbf16>
    %cst = arith.constant dense<0.000000e+00> : vector<16x384xf32>
    %7 = tpu.matmul %4, %6, %cst {dimension_numbers = #tpu.dot_dimension_numbers<[1], [0], [0], [1], [0, 0, 1, 1], [], []>} : vector<16x128xbf16>, vector<128x384xbf16>, vector<16x384xf32> -> vector<16x384xf32>
    %c0_5 = arith.constant 0 : index
    %c0_6 = arith.constant 0 : index
    %c0_7 = arith.constant 0 : index
    %8 = vector.load %arg6[%c0_5, %c0_6, %c0_7] : memref<1x1x384xf32, #tpu.memory_space<vmem>>, vector<1x1x384xf32>
    %9 = vector.shape_cast %8 : vector<1x1x384xf32> to vector<1x384xf32>
    %10 = vector.broadcast %9 : vector<1x384xf32> to vector<16x384xf32>
    %11 = arith.addf %7, %10 : vector<16x384xf32>
    %12 = vector.extract_strided_slice %11 {offsets = [0, 0], sizes = [16, 128], strides = [1, 1]} : vector<16x384xf32> to vector<16x128xf32>
    %13 = vector.extract_strided_slice %11 {offsets = [0, 128], sizes = [16, 128], strides = [1, 1]} : vector<16x384xf32> to vector<16x128xf32>
    %14 = vector.extract_strided_slice %11 {offsets = [0, 256], sizes = [16, 128], strides = [1, 1]} : vector<16x384xf32> to vector<16x128xf32>
    %c0_8 = arith.constant 0 : index
    %c0_9 = arith.constant 0 : index
    %c0_10 = arith.constant 0 : index
    %15 = vector.load %arg3[%c0_8, %c0_9, %c0_10] : memref<4x1x128xf32, #tpu.memory_space<vmem>>, vector<4x1x128xf32>
    %16 = vector.shape_cast %13 : vector<16x128xf32> to vector<1x16x128xf32>
    %17 = vector.broadcast %15 : vector<4x1x128xf32> to vector<4x16x128xf32>
    %18 = vector.broadcast %16 : vector<1x16x128xf32> to vector<4x16x128xf32>
    %19 = arith.mulf %17, %18 : vector<4x16x128xf32>
    %20 = vector.shape_cast %19 : vector<4x16x128xf32> to vector<64x128xf32>
    %21 = vector.shape_cast %14 : vector<16x128xf32> to vector<1x16x128xf32>
    %22 = vector.broadcast %15 : vector<4x1x128xf32> to vector<4x16x128xf32>
    %23 = vector.broadcast %21 : vector<1x16x128xf32> to vector<4x16x128xf32>
    %24 = arith.mulf %22, %23 : vector<4x16x128xf32>
    %25 = vector.shape_cast %24 : vector<4x16x128xf32> to vector<64x128xf32>
    %26 = arith.truncf %20 : vector<64x128xf32> to vector<64x128xbf16>
    %27 = arith.truncf %25 : vector<64x128xf32> to vector<64x128xbf16>
    %28 = arith.truncf %12 : vector<16x128xf32> to vector<16x128xbf16>
    %cst_11 = arith.constant dense<0.000000e+00> : vector<16x64xf32>
    %29 = tpu.matmul %28, %26, %cst_11 {dimension_numbers = #tpu.dot_dimension_numbers<[1], [1], [0], [0], [0, 0, 1, 0], [], []>} : vector<16x128xbf16>, vector<64x128xbf16>, vector<16x64xf32> -> vector<16x64xf32>
    %c0_12 = arith.constant 0 : index
    %c0_13 = arith.constant 0 : index
    %30 = vector.load %arg2[%c0_12, %c0_13] : memref<16x64xf32, #tpu.memory_space<vmem>>, vector<16x64xf32>
    %31 = arith.addf %29, %30 : vector<16x64xf32>
    %cst_14 = arith.constant dense<0xFF800000> : vector<16xf32>
    %32 = vector.multi_reduction <maximumf>, %31, %cst_14 [1] : vector<16x64xf32> to vector<16xf32>
    %33 = vector.shape_cast %32 : vector<16xf32> to vector<16x1xf32>
    %34 = vector.broadcast %33 : vector<16x1xf32> to vector<16x64xf32>
    %35 = arith.subf %31, %34 : vector<16x64xf32>
    %36 = math.exp %35 : vector<16x64xf32>
    %37 = arith.truncf %36 : vector<16x64xf32> to vector<16x64xbf16>
    %cst_15 = arith.constant dense<0.000000e+00> : vector<16x128xf32>
    %38 = tpu.matmul %37, %27, %cst_15 {dimension_numbers = #tpu.dot_dimension_numbers<[1], [0], [0], [1], [0, 0, 1, 1], [], []>} : vector<16x64xbf16>, vector<64x128xbf16>, vector<16x128xf32> -> vector<16x128xf32>
    %c0_16 = arith.constant 0 : index
    %c0_17 = arith.constant 0 : index
    %39 = vector.load %arg4[%c0_16, %c0_17] : memref<64x128xbf16, #tpu.memory_space<vmem>>, vector<64x128xbf16>
    %cst_18 = arith.constant dense<0.000000e+00> : vector<16x128xf32>
    %40 = tpu.matmul %37, %39, %cst_18 {dimension_numbers = #tpu.dot_dimension_numbers<[1], [0], [0], [1], [0, 0, 1, 1], [], []>} : vector<16x64xbf16>, vector<64x128xbf16>, vector<16x128xf32> -> vector<16x128xf32>
    %cst_19 = arith.constant 9.99999968E-21 : f32
    %41 = vector.broadcast %cst_19 : f32 to vector<16x128xf32>
    %42 = arith.maximumf %40, %41 : vector<16x128xf32>
    %43 = tpu.reciprocal %42 {approx = true} : vector<16x128xf32> -> vector<16x128xf32>
    %44 = arith.mulf %38, %43 : vector<16x128xf32>
    %45 = arith.truncf %44 : vector<16x128xf32> to vector<16x128xbf16>
    %c0_20 = arith.constant 0 : index
    %c0_21 = arith.constant 0 : index
    %c0_22 = arith.constant 0 : index
    %46 = vector.load %arg7[%c0_20, %c0_21, %c0_22] : memref<1x128x128xbf16, #tpu.memory_space<vmem>>, vector<1x128x128xbf16>
    %47 = vector.shape_cast %46 : vector<1x128x128xbf16> to vector<128x128xbf16>
    %cst_23 = arith.constant dense<0.000000e+00> : vector<16x128xf32>
    %48 = tpu.matmul %45, %47, %cst_23 {dimension_numbers = #tpu.dot_dimension_numbers<[1], [0], [0], [1], [0, 0, 1, 1], [], []>} : vector<16x128xbf16>, vector<128x128xbf16>, vector<16x128xf32> -> vector<16x128xf32>
    %c0_24 = arith.constant 0 : index
    %c0_25 = arith.constant 0 : index
    %c0_26 = arith.constant 0 : index
    %49 = vector.load %arg8[%c0_24, %c0_25, %c0_26] : memref<1x1x128xf32, #tpu.memory_space<vmem>>, vector<1x1x128xf32>
    %50 = vector.shape_cast %49 : vector<1x1x128xf32> to vector<1x128xf32>
    %51 = vector.broadcast %50 : vector<1x128xf32> to vector<16x128xf32>
    %52 = arith.addf %48, %51 : vector<16x128xf32>
    %53 = arith.addf %3, %52 : vector<16x128xf32>
    %c0_27 = arith.constant 0 : index
    %c0_28 = arith.constant 0 : index
    %c0_29 = arith.constant 0 : index
    %54 = vector.load %arg9[%c0_27, %c0_28, %c0_29] : memref<1x1x128xf32, #tpu.memory_space<vmem>>, vector<1x1x128xf32>
    %55 = vector.shape_cast %54 : vector<1x1x128xf32> to vector<1x128xf32>
    %c0_30 = arith.constant 0 : index
    %c0_31 = arith.constant 0 : index
    %c0_32 = arith.constant 0 : index
    %56 = vector.load %arg10[%c0_30, %c0_31, %c0_32] : memref<1x1x128xf32, #tpu.memory_space<vmem>>, vector<1x1x128xf32>
    %57 = vector.shape_cast %56 : vector<1x1x128xf32> to vector<1x128xf32>
    %cst_33 = arith.constant dense<0.000000e+00> : vector<16xf32>
    %58 = vector.multi_reduction <add>, %53, %cst_33 [1] : vector<16x128xf32> to vector<16xf32>
    %59 = vector.shape_cast %58 : vector<16xf32> to vector<16x1xf32>
    %cst_34 = arith.constant 1.280000e+02 : f32
    %60 = vector.broadcast %cst_34 : f32 to vector<16x1xf32>
    %61 = arith.divf %59, %60 : vector<16x1xf32>
    %62 = vector.broadcast %61 : vector<16x1xf32> to vector<16x128xf32>
    %63 = arith.subf %53, %62 : vector<16x128xf32>
    %64 = arith.mulf %63, %63 : vector<16x128xf32>
    %cst_35 = arith.constant dense<0.000000e+00> : vector<16xf32>
    %65 = vector.multi_reduction <add>, %64, %cst_35 [1] : vector<16x128xf32> to vector<16xf32>
    %66 = vector.shape_cast %65 : vector<16xf32> to vector<16x1xf32>
    %cst_36 = arith.constant 1.280000e+02 : f32
    %67 = vector.broadcast %cst_36 : f32 to vector<16x1xf32>
    %68 = arith.divf %66, %67 : vector<16x1xf32>
    %69 = vector.broadcast %61 : vector<16x1xf32> to vector<16x128xf32>
    %70 = arith.subf %53, %69 : vector<16x128xf32>
    %cst_37 = arith.constant 9.99999974E-6 : f32
    %71 = vector.broadcast %cst_37 : f32 to vector<16x1xf32>
    %72 = arith.addf %68, %71 : vector<16x1xf32>
    %73 = math.rsqrt %72 : vector<16x1xf32>
    %74 = vector.broadcast %73 : vector<16x1xf32> to vector<16x128xf32>
    %75 = arith.mulf %70, %74 : vector<16x128xf32>
    %76 = vector.broadcast %55 : vector<1x128xf32> to vector<16x128xf32>
    %77 = arith.mulf %75, %76 : vector<16x128xf32>
    %78 = vector.broadcast %57 : vector<1x128xf32> to vector<16x128xf32>
    %79 = arith.addf %77, %78 : vector<16x128xf32>
    %80 = arith.truncf %79 : vector<16x128xf32> to vector<16x128xbf16>
    %c0_38 = arith.constant 0 : index
    %c0_39 = arith.constant 0 : index
    %c0_40 = arith.constant 0 : index
    %81 = vector.load %arg11[%c0_38, %c0_39, %c0_40] : memref<1x128x512xbf16, #tpu.memory_space<vmem>>, vector<1x128x512xbf16>
    %82 = vector.shape_cast %81 : vector<1x128x512xbf16> to vector<128x512xbf16>
    %cst_41 = arith.constant dense<0.000000e+00> : vector<16x512xf32>
    %83 = tpu.matmul %80, %82, %cst_41 {dimension_numbers = #tpu.dot_dimension_numbers<[1], [0], [0], [1], [0, 0, 1, 1], [], []>} : vector<16x128xbf16>, vector<128x512xbf16>, vector<16x512xf32> -> vector<16x512xf32>
    %c0_42 = arith.constant 0 : index
    %c0_43 = arith.constant 0 : index
    %c0_44 = arith.constant 0 : index
    %84 = vector.load %arg12[%c0_42, %c0_43, %c0_44] : memref<1x1x512xf32, #tpu.memory_space<vmem>>, vector<1x1x512xf32>
    %85 = vector.shape_cast %84 : vector<1x1x512xf32> to vector<1x512xf32>
    %86 = vector.broadcast %85 : vector<1x512xf32> to vector<16x512xf32>
    %87 = arith.addf %83, %86 : vector<16x512xf32>
    %cst_45 = arith.constant 0.000000e+00 : f32
    %88 = vector.broadcast %cst_45 : f32 to vector<16x512xf32>
    %89 = arith.maximumf %87, %88 : vector<16x512xf32>
    %90 = arith.truncf %89 : vector<16x512xf32> to vector<16x512xbf16>
    %c0_46 = arith.constant 0 : index
    %c0_47 = arith.constant 0 : index
    %c0_48 = arith.constant 0 : index
    %91 = vector.load %arg13[%c0_46, %c0_47, %c0_48] : memref<1x512x128xbf16, #tpu.memory_space<vmem>>, vector<1x512x128xbf16>
    %92 = vector.shape_cast %91 : vector<1x512x128xbf16> to vector<512x128xbf16>
    %cst_49 = arith.constant dense<0.000000e+00> : vector<16x128xf32>
    %93 = tpu.matmul %90, %92, %cst_49 {dimension_numbers = #tpu.dot_dimension_numbers<[1], [0], [0], [1], [0, 0, 1, 1], [], []>} : vector<16x512xbf16>, vector<512x128xbf16>, vector<16x128xf32> -> vector<16x128xf32>
    %c0_50 = arith.constant 0 : index
    %c0_51 = arith.constant 0 : index
    %c0_52 = arith.constant 0 : index
    %94 = vector.load %arg14[%c0_50, %c0_51, %c0_52] : memref<1x1x128xf32, #tpu.memory_space<vmem>>, vector<1x1x128xf32>
    %95 = vector.shape_cast %94 : vector<1x1x128xf32> to vector<1x128xf32>
    %96 = vector.broadcast %95 : vector<1x128xf32> to vector<16x128xf32>
    %97 = arith.addf %93, %96 : vector<16x128xf32>
    %98 = arith.addf %79, %97 : vector<16x128xf32>
    %c0_53 = arith.constant 0 : index
    %c0_54 = arith.constant 0 : index
    %c0_55 = arith.constant 0 : index
    %99 = vector.load %arg15[%c0_53, %c0_54, %c0_55] : memref<1x1x128xf32, #tpu.memory_space<vmem>>, vector<1x1x128xf32>
    %100 = vector.shape_cast %99 : vector<1x1x128xf32> to vector<1x128xf32>
    %c0_56 = arith.constant 0 : index
    %c0_57 = arith.constant 0 : index
    %c0_58 = arith.constant 0 : index
    %101 = vector.load %arg16[%c0_56, %c0_57, %c0_58] : memref<1x1x128xf32, #tpu.memory_space<vmem>>, vector<1x1x128xf32>
    %102 = vector.shape_cast %101 : vector<1x1x128xf32> to vector<1x128xf32>
    %cst_59 = arith.constant dense<0.000000e+00> : vector<16xf32>
    %103 = vector.multi_reduction <add>, %98, %cst_59 [1] : vector<16x128xf32> to vector<16xf32>
    %104 = vector.shape_cast %103 : vector<16xf32> to vector<16x1xf32>
    %cst_60 = arith.constant 1.280000e+02 : f32
    %105 = vector.broadcast %cst_60 : f32 to vector<16x1xf32>
    %106 = arith.divf %104, %105 : vector<16x1xf32>
    %107 = vector.broadcast %106 : vector<16x1xf32> to vector<16x128xf32>
    %108 = arith.subf %98, %107 : vector<16x128xf32>
    %109 = arith.mulf %108, %108 : vector<16x128xf32>
    %cst_61 = arith.constant dense<0.000000e+00> : vector<16xf32>
    %110 = vector.multi_reduction <add>, %109, %cst_61 [1] : vector<16x128xf32> to vector<16xf32>
    %111 = vector.shape_cast %110 : vector<16xf32> to vector<16x1xf32>
    %cst_62 = arith.constant 1.280000e+02 : f32
    %112 = vector.broadcast %cst_62 : f32 to vector<16x1xf32>
    %113 = arith.divf %111, %112 : vector<16x1xf32>
    %114 = vector.broadcast %106 : vector<16x1xf32> to vector<16x128xf32>
    %115 = arith.subf %98, %114 : vector<16x128xf32>
    %cst_63 = arith.constant 9.99999974E-6 : f32
    %116 = vector.broadcast %cst_63 : f32 to vector<16x1xf32>
    %117 = arith.addf %113, %116 : vector<16x1xf32>
    %118 = math.rsqrt %117 : vector<16x1xf32>
    %119 = vector.broadcast %118 : vector<16x1xf32> to vector<16x128xf32>
    %120 = arith.mulf %115, %119 : vector<16x128xf32>
    %121 = vector.broadcast %100 : vector<1x128xf32> to vector<16x128xf32>
    %122 = arith.mulf %120, %121 : vector<16x128xf32>
    %123 = vector.broadcast %102 : vector<1x128xf32> to vector<16x128xf32>
    %124 = arith.addf %122, %123 : vector<16x128xf32>
    %c0_64 = arith.constant 0 : index
    %c0_65 = arith.constant 0 : index
    %125 = vector.load %arg20[%c0_64, %c0_65] : memref<16x128xf32, #tpu.memory_space<vmem>>, vector<16x128xf32>
    tpu.vector_store %arg20[%c0_64, %c0_65], %124 {strides = array<i32>} : memref<16x128xf32, #tpu.memory_space<vmem>>, vector<16x128xf32>,
    %c1_i32 = arith.constant 1 : i32
    %126 = arith.cmpi eq, %arg0, %c1_i32 : i32
    %127 = arith.extui %126 : i1 to i32
    %c0_i32_66 = arith.constant 0 : i32
    %128 = arith.cmpi ne, %127, %c0_i32_66 : i32
    scf.if %128 {
      %129 = arith.truncf %124 : vector<16x128xf32> to vector<16x128xbf16>
      %c0_67 = arith.constant 0 : index
      %c0_68 = arith.constant 0 : index
      %130 = vector.load %arg17[%c0_67, %c0_68] : memref<128x128xbf16, #tpu.memory_space<vmem>>, vector<128x128xbf16>
      %cst_69 = arith.constant dense<0.000000e+00> : vector<16x128xf32>
      %131 = tpu.matmul %129, %130, %cst_69 {dimension_numbers = #tpu.dot_dimension_numbers<[1], [0], [0], [1], [0, 0, 1, 1], [], []>} : vector<16x128xbf16>, vector<128x128xbf16>, vector<16x128xf32> -> vector<16x128xf32>
      %c0_70 = arith.constant 0 : index
      %c0_71 = arith.constant 0 : index
      %132 = vector.load %arg18[%c0_70, %c0_71] : memref<1x128xf32, #tpu.memory_space<vmem>>, vector<1x128xf32>
      %133 = vector.broadcast %132 : vector<1x128xf32> to vector<16x128xf32>
      %134 = arith.addf %131, %133 : vector<16x128xf32>
      %135 = vector.shape_cast %134 : vector<16x128xf32> to vector<2x8x128xf32>
      %c0_72 = arith.constant 0 : index
      %c0_73 = arith.constant 0 : index
      %c0_74 = arith.constant 0 : index
      %136 = vector.load %arg19[%c0_72, %c0_73, %c0_74] : memref<2x8x128xf32, #tpu.memory_space<vmem>>, vector<2x8x128xf32>
      tpu.vector_store %arg19[%c0_72, %c0_73, %c0_74], %135 {strides = array<i32>} : memref<2x8x128xf32, #tpu.memory_space<vmem>>, vector<2x8x128xf32>,
    } else {
    }
    return
  }
  func.func @transform_0(%arg0: i32) -> (i32, i32, i32) {
    %c0_i32 = arith.constant 0 : i32
    %c0_i32_0 = arith.constant 0 : i32
    %c0_i32_1 = arith.constant 0 : i32
    %c0_i32_2 = arith.constant 0 : i32
    return %c0_i32, %c0_i32_0, %c0_i32_1 : i32, i32, i32
  }
  func.func @transform_1(%arg0: i32) -> (i32, i32) {
    %c0_i32 = arith.constant 0 : i32
    %c0_i32_0 = arith.constant 0 : i32
    %c0_i32_1 = arith.constant 0 : i32
    return %c0_i32, %c0_i32_0 : i32, i32
  }
  func.func @transform_2(%arg0: i32) -> (i32, i32, i32) {
    %c0_i32 = arith.constant 0 : i32
    %c0_i32_0 = arith.constant 0 : i32
    %c0_i32_1 = arith.constant 0 : i32
    %c0_i32_2 = arith.constant 0 : i32
    return %c0_i32, %c0_i32_0, %c0_i32_1 : i32, i32, i32
  }
  func.func @transform_3(%arg0: i32) -> (i32, i32) {
    %c0_i32 = arith.constant 0 : i32
    %c0_i32_0 = arith.constant 0 : i32
    %c0_i32_1 = arith.constant 0 : i32
    return %c0_i32, %c0_i32_0 : i32, i32
  }
  func.func @transform_4(%arg0: i32) -> (i32, i32, i32) {
    %c0_i32 = arith.constant 0 : i32
    %c0_i32_0 = arith.constant 0 : i32
    %c0_i32_1 = arith.constant 0 : i32
    return %arg0, %c0_i32, %c0_i32_0 : i32, i32, i32
  }
  func.func @transform_5(%arg0: i32) -> (i32, i32, i32) {
    %c0_i32 = arith.constant 0 : i32
    %c0_i32_0 = arith.constant 0 : i32
    %c0_i32_1 = arith.constant 0 : i32
    return %arg0, %c0_i32, %c0_i32_0 : i32, i32, i32
  }
  func.func @transform_6(%arg0: i32) -> (i32, i32, i32) {
    %c0_i32 = arith.constant 0 : i32
    %c0_i32_0 = arith.constant 0 : i32
    %c0_i32_1 = arith.constant 0 : i32
    return %arg0, %c0_i32, %c0_i32_0 : i32, i32, i32
  }
  func.func @transform_7(%arg0: i32) -> (i32, i32, i32) {
    %c0_i32 = arith.constant 0 : i32
    %c0_i32_0 = arith.constant 0 : i32
    %c0_i32_1 = arith.constant 0 : i32
    return %arg0, %c0_i32, %c0_i32_0 : i32, i32, i32
  }
  func.func @transform_8(%arg0: i32) -> (i32, i32, i32) {
    %c0_i32 = arith.constant 0 : i32
    %c0_i32_0 = arith.constant 0 : i32
    %c0_i32_1 = arith.constant 0 : i32
    return %arg0, %c0_i32, %c0_i32_0 : i32, i32, i32
  }
  func.func @transform_9(%arg0: i32) -> (i32, i32, i32) {
    %c0_i32 = arith.constant 0 : i32
    %c0_i32_0 = arith.constant 0 : i32
    %c0_i32_1 = arith.constant 0 : i32
    return %arg0, %c0_i32, %c0_i32_0 : i32, i32, i32
  }
  func.func @transform_10(%arg0: i32) -> (i32, i32, i32) {
    %c0_i32 = arith.constant 0 : i32
    %c0_i32_0 = arith.constant 0 : i32
    %c0_i32_1 = arith.constant 0 : i32
    return %arg0, %c0_i32, %c0_i32_0 : i32, i32, i32
  }
  func.func @transform_11(%arg0: i32) -> (i32, i32, i32) {
    %c0_i32 = arith.constant 0 : i32
    %c0_i32_0 = arith.constant 0 : i32
    %c0_i32_1 = arith.constant 0 : i32
    return %arg0, %c0_i32, %c0_i32_0 : i32, i32, i32
  }
  func.func @transform_12(%arg0: i32) -> (i32, i32, i32) {
    %c0_i32 = arith.constant 0 : i32
    %c0_i32_0 = arith.constant 0 : i32
    %c0_i32_1 = arith.constant 0 : i32
    return %arg0, %c0_i32, %c0_i32_0 : i32, i32, i32
  }
  func.func @transform_13(%arg0: i32) -> (i32, i32, i32) {
    %c0_i32 = arith.constant 0 : i32
    %c0_i32_0 = arith.constant 0 : i32
    %c0_i32_1 = arith.constant 0 : i32
    return %arg0, %c0_i32, %c0_i32_0 : i32, i32, i32
  }
  func.func @transform_14(%arg0: i32) -> (i32, i32, i32) {
    %c0_i32 = arith.constant 0 : i32
    %c0_i32_0 = arith.constant 0 : i32
    %c0_i32_1 = arith.constant 0 : i32
    return %arg0, %c0_i32, %c0_i32_0 : i32, i32, i32
  }
  func.func @transform_15(%arg0: i32) -> (i32, i32, i32) {
    %c0_i32 = arith.constant 0 : i32
    %c0_i32_0 = arith.constant 0 : i32
    %c0_i32_1 = arith.constant 0 : i32
    return %arg0, %c0_i32, %c0_i32_0 : i32, i32, i32
  }
  func.func @transform_16(%arg0: i32) -> (i32, i32) {
    %c0_i32 = arith.constant 0 : i32
    %c0_i32_0 = arith.constant 0 : i32
    %c0_i32_1 = arith.constant 0 : i32
    return %c0_i32, %c0_i32_0 : i32, i32
  }
  func.func @transform_17(%arg0: i32) -> (i32, i32) {
    %c0_i32 = arith.constant 0 : i32
    %c0_i32_0 = arith.constant 0 : i32
    %c0_i32_1 = arith.constant 0 : i32
    return %c0_i32, %c0_i32_0 : i32, i32
  }
  func.func @transform_18(%arg0: i32) -> (i32, i32, i32) {
    %c0_i32 = arith.constant 0 : i32
    %c0_i32_0 = arith.constant 0 : i32
    %c0_i32_1 = arith.constant 0 : i32
    %c0_i32_2 = arith.constant 0 : i32
    return %c0_i32, %c0_i32_0, %c0_i32_1 : i32, i32, i32
  }
}

</mosaic_0001>

<llo_original>
// kernel: small_transformer_lm_forward.1
$region0: #{small_transformer_lm_forward.1}
  #allocation0 [shape = 'u32[]', space=smem, size = 0x4, offset = 0x4, fixed_abs, tag = 'smem constant byte address 0x4 - core index']
  #allocation1 [shape = 'u32[72,128]{1,0:T(1,128)}', space=vmem, size = 0x9000, scoped, tag = 'internal scratch']
  #allocation2 [shape = 'f32[16,128]{1,0:T(8,128)}', space=vmem, size = 0x2000, scoped, tag = 'scratch operand']
  %s0 = inlined_call_operand.vmem [shape: f32[2,8,128], index: 0, kind: input, shape index: {}]
  %s1 = inlined_call_operand.vmem [shape: f32[16,64], index: 1, kind: input, shape index: {}]
  %s2 = inlined_call_operand.vmem [shape: f32[4,1,128], index: 2, kind: input, shape index: {}]
  %s3 = inlined_call_operand.vmem [shape: bf16[64,128], index: 3, kind: input, shape index: {}]
  %s4 = inlined_call_operand.hbm [shape: bf16[2,128,384], index: 4, kind: input, shape index: {}]
  %s5 = inlined_call_operand.vmem [shape: f32[2,1,384], index: 5, kind: input, shape index: {}]
  %s6 = inlined_call_operand.vmem [shape: bf16[2,128,128], index: 6, kind: input, shape index: {}]
  %s7 = inlined_call_operand.vmem [shape: f32[2,1,128], index: 7, kind: input, shape index: {}]
  %s8 = inlined_call_operand.vmem [shape: f32[2,1,128], index: 8, kind: input, shape index: {}]
  %s9 = inlined_call_operand.vmem [shape: f32[2,1,128], index: 9, kind: input, shape index: {}]
  %s10 = inlined_call_operand.hbm [shape: bf16[2,128,512], index: 10, kind: input, shape index: {}]
  %s11 = inlined_call_operand.vmem [shape: f32[2,1,512], index: 11, kind: input, shape index: {}]
  %s12 = inlined_call_operand.hbm [shape: bf16[2,512,128], index: 12, kind: input, shape index: {}]
  %s13 = inlined_call_operand.vmem [shape: f32[2,1,128], index: 13, kind: input, shape index: {}]
  %s14 = inlined_call_operand.vmem [shape: f32[2,1,128], index: 14, kind: input, shape index: {}]
  %s15 = inlined_call_operand.vmem [shape: f32[2,1,128], index: 15, kind: input, shape index: {}]
  %s16 = inlined_call_operand.vmem [shape: bf16[128,128], index: 16, kind: input, shape index: {}]
  %s17 = inlined_call_operand.vmem [shape: f32[1,128], index: 17, kind: input, shape index: {}]
  %s18 = inlined_call_operand.hbm [shape: f32[2,8,128], index: 18, kind: output, shape index: {}]
  %s19 = sld [smem:[#allocation0]]
  $region125: #{small_transformer_lm_forward.1} parent=0
    _
  %s21 = ssub.s32 1, %s19
  %s22 = scalar_select 0, %s21, %s19
  $region1: #{small_transformer_lm_forward.1} parent=0
    #allocation3 [shape = 'u8[196608]{0}', space=vmem, size = 0x30000, scoped, tag = 'input window, operand 4']
    #allocation4 [shape = 's32[2]{0}', space=sflag, size = 0x8, scoped, tag = 'scoped memory for small_transformer_lm_forward.1']
    #allocation5 [shape = 's32[2]{0}', space=sflag, size = 0x8, scoped, tag = 'scoped memory for small_transformer_lm_forward.1']
    #allocation6 [shape = 'u8[262144]{0}', space=vmem, size = 0x40000, scoped, tag = 'input window, operand 10']
    #allocation7 [shape = 's32[2]{0}', space=sflag, size = 0x8, scoped, tag = 'scoped memory for small_transformer_lm_forward.1']
    #allocation8 [shape = 'u8[262144]{0}', space=vmem, size = 0x40000, scoped, tag = 'input window, operand 12']
    #allocation9 [shape = 'u8[8192]{0}', space=vmem, size = 0x2000, scoped, tag = 'output window, operand 0, single buffered']
    %23 = vsyncpa [#allocation4], 0
    %s24 = scalar_lea.sflag [#allocation4], 1
    %25 = vsyncpa %s24, 0
    %26 = vsyncpa [#allocation7], 0
    %s27 = scalar_lea.sflag [#allocation7], 1
    %28 = vsyncpa %s27, 0
    %29 = vsyncpa [#allocation5], 0
    loop: start=0, step=1, limit=4
    $region2: #{small_transformer_lm_forward.1} parent=1 // loop_pre_header
      _
    $region3: #{small_transformer_lm_forward.1} parent=1 // loop_header
      %s31 = sphi 0, %s35
      %p32 = scmp.ge.s32.totalorder %s31, 4
      %s39 = sphi 0, %s39
      %s41 = sphi 0, %s39
      %s42 = sphi 0, %s41
      %s56 = sphi 0, %s42
      %s60 = sphi 0, %s60
      %s62 = sphi 0, %s60
      %s63 = sphi 0, %s62
      %s77 = sphi 0, %s63
      %s81 = sphi 0, %s81
      %s83 = sphi 0, %s81
      %s84 = sphi 0, %s83
      %s98 = sphi 0, %s84
      %s102 = sphi 0, %s102
      %s104 = sphi 0, %s102
      %s105 = sphi 0, %s104
      %s119 = sphi 0, %s105
      %s125 = sphi 0, %s127
      %s128 = sphi 0, %s125
      %s129 = sphi 0, %s128
      %s145 = sphi 0, %s129
      %s151 = sphi 0, %s153
      %s154 = sphi 0, %s151
      %s155 = sphi 0, %s154
      %s171 = sphi 0, %s155
      %s177 = sphi 0, %s179
      %s180 = sphi 0, %s177
      %s181 = sphi 0, %s180
      %s197 = sphi 0, %s181
      %s203 = sphi 0, %s205
      %s206 = sphi 0, %s203
      %s207 = sphi 0, %s206
      %s223 = sphi 0, %s207
      %s229 = sphi 0, %s231
      %s232 = sphi 0, %s229
      %s233 = sphi 0, %s232
      %s249 = sphi 0, %s233
      %s255 = sphi 0, %s257
      %s258 = sphi 0, %s255
      %s259 = sphi 0, %s258
      %s275 = sphi 0, %s259
      %s281 = sphi 0, %s283
      %s284 = sphi 0, %s281
      %s285 = sphi 0, %s284
      %s301 = sphi 0, %s285
      %s307 = sphi 0, %s309
      %s310 = sphi 0, %s307
      %s311 = sphi 0, %s310
      %s327 = sphi 0, %s311
      %s333 = sphi 0, %s335
      %s336 = sphi 0, %s333
      %s337 = sphi 0, %s336
      %s353 = sphi 0, %s337
      %s359 = sphi 0, %s361
      %s362 = sphi 0, %s359
      %s363 = sphi 0, %s362
      %s379 = sphi 0, %s363
      %s385 = sphi 0, %s387
      %s388 = sphi 0, %s385
      %s389 = sphi 0, %s388
      %s405 = sphi 0, %s389
      %s411 = sphi 0, %s413
      %s414 = sphi 0, %s411
      %s415 = sphi 0, %s414
      %s431 = sphi 0, %s415
      %s435 = sphi 0, %s435
      %s437 = sphi 0, %s435
      %s438 = sphi 0, %s437
      %s452 = sphi 0, %s438
      %s456 = sphi 0, %s456
      %s458 = sphi 0, %s456
      %s459 = sphi 0, %s458
      %s473 = sphi 0, %s459
      %s477 = sphi 0, %s477
      %s479 = sphi 0, %s477
      %s480 = sphi 0, %s479
      %s494 = sphi 0, %s480
    $region4: #{small_transformer_lm_forward.1} parent=1 // loop_header_branch
      %34 = sbr.rel (%p32) target = $region8
    $region5: #{small_transformer_lm_forward.1} parent=1 // loop_body
      %s36 = ssub.s32 %s31, 1
      %s37 = ssub.s32 %s31, 2
      %s38 = sadd.s32 %s31, 1
      %s40 = sadd.s32 %s39, 1
      %p43 = scmp.eq.s32.totalorder %s31, 1
      %p44 = scmp.ne.s32.totalorder %s39, %s41
      %p45 = scmp.eq.s32.totalorder %s31, 0
      %p46 = por %p44, %p45
      %p47 = scmp.ne.s32.totalorder %s39, %s41
      %p48 = scmp.eq.s32.totalorder %s36, 1
      %p49 = por %p47, %p48
      %p50 = scmp.ne.s32.totalorder %s41, %s42
      %p51 = scmp.eq.s32.totalorder %s36, 0
      %p52 = por %p50, %p51
      %p53 = scmp.ne.s32.totalorder %s41, %s42
      %p54 = scmp.eq.s32.totalorder %s37, 1
      %p55 = por %p53, %p54
      %p57 = scmp.ne.s32.totalorder %s42, %s56
      %p58 = scmp.eq.s32.totalorder %s37, 0
      %p59 = por %p57, %p58
      %s61 = sadd.s32 %s60, 1
      %p64 = scmp.eq.s32.totalorder %s31, 1
      %p65 = scmp.ne.s32.totalorder %s60, %s62
      %p66 = scmp.eq.s32.totalorder %s31, 0
      %p67 = por %p65, %p66
      %p68 = scmp.ne.s32.totalorder %s60, %s62
      %p69 = scmp.eq.s32.totalorder %s36, 1
      %p70 = por %p68, %p69
      %p71 = scmp.ne.s32.totalorder %s62, %s63
      %p72 = scmp.eq.s32.totalorder %s36, 0
      %p73 = por %p71, %p72
      %p74 = scmp.ne.s32.totalorder %s62, %s63
      %p75 = scmp.eq.s32.totalorder %s37, 1
      %p76 = por %p74, %p75
      %p78 = scmp.ne.s32.totalorder %s63, %s77
      %p79 = scmp.eq.s32.totalorder %s37, 0
      %p80 = por %p78, %p79
      %s82 = sadd.s32 %s81, 1
      %p85 = scmp.eq.s32.totalorder %s31, 1
      %p86 = scmp.ne.s32.totalorder %s81, %s83
      %p87 = scmp.eq.s32.totalorder %s31, 0
      %p88 = por %p86, %p87
      %p89 = scmp.ne.s32.totalorder %s81, %s83
      %p90 = scmp.eq.s32.totalorder %s36, 1
      %p91 = por %p89, %p90
      %p92 = scmp.ne.s32.totalorder %s83, %s84
      %p93 = scmp.eq.s32.totalorder %s36, 0
      %p94 = por %p92, %p93
      %p95 = scmp.ne.s32.totalorder %s83, %s84
      %p96 = scmp.eq.s32.totalorder %s37, 1
      %p97 = por %p95, %p96
      %p99 = scmp.ne.s32.totalorder %s84, %s98
      %p100 = scmp.eq.s32.totalorder %s37, 0
      %p101 = por %p99, %p100
      %s103 = sadd.s32 %s102, 1
      %p106 = scmp.eq.s32.totalorder %s31, 1
      %p107 = scmp.ne.s32.totalorder %s102, %s104
      %p108 = scmp.eq.s32.totalorder %s31, 0
      %p109 = por %p107, %p108
      %p110 = scmp.ne.s32.totalorder %s102, %s104
      %p111 = scmp.eq.s32.totalorder %s36, 1
      %p112 = por %p110, %p111
      %p113 = scmp.ne.s32.totalorder %s104, %s105
      %p114 = scmp.eq.s32.totalorder %s36, 0
      %p115 = por %p113, %p114
      %p116 = scmp.ne.s32.totalorder %s104, %s105
      %p117 = scmp.eq.s32.totalorder %s37, 1
      %p118 = por %p116, %p117
      %p120 = scmp.ne.s32.totalorder %s105, %s119
      %p121 = scmp.eq.s32.totalorder %s37, 0
      %p122 = por %p120, %p121
      %s123 = ssub.s32 %s31, %s38
      %p124 = scmp.eq.s32.totalorder %s123, 0
      %s126 = sadd.s32 %s125, 1
      %s127 = scalar_select %p124, %s125, %s126
      %p130 = pneg %p124
      %p131 = scmp.eq.s32.totalorder %s31, 1
      %p132 = por %p130, %p131
      %p133 = scmp.ne.s32.totalorder %s125, %s128
      %p134 = scmp.eq.s32.totalorder %s31, 0
      %p135 = por %p133, %p134
      %p136 = scmp.ne.s32.totalorder %s125, %s128
      %p137 = scmp.eq.s32.totalorder %s36, 1
      %p138 = por %p136, %p137
      %p139 = scmp.ne.s32.totalorder %s128, %s129
      %p140 = scmp.eq.s32.totalorder %s36, 0
      %p141 = por %p139, %p140
      %p142 = scmp.ne.s32.totalorder %s128, %s129
      %p143 = scmp.eq.s32.totalorder %s37, 1
      %p144 = por %p142, %p143
      %p146 = scmp.ne.s32.totalorder %s129, %s145
      %p147 = scmp.eq.s32.totalorder %s37, 0
      %p148 = por %p146, %p147
      %s149 = ssub.s32 %s31, %s38
      %p150 = scmp.eq.s32.totalorder %s149, 0
      %s152 = sadd.s32 %s151, 1
      %s153 = scalar_select %p150, %s151, %s152
      %p156 = pneg %p150
      %p157 = scmp.eq.s32.totalorder %s31, 1
      %p158 = por %p156, %p157
      %p159 = scmp.ne.s32.totalorder %s151, %s154
      %p160 = scmp.eq.s32.totalorder %s31, 0
      %p161 = por %p159, %p160
      %p162 = scmp.ne.s32.totalorder %s151, %s154
      %p163 = scmp.eq.s32.totalorder %s36, 1
      %p164 = por %p162, %p163
      %p165 = scmp.ne.s32.totalorder %s154, %s155
      %p166 = scmp.eq.s32.totalorder %s36, 0
      %p167 = por %p165, %p166
      %p168 = scmp.ne.s32.totalorder %s154, %s155
      %p169 = scmp.eq.s32.totalorder %s37, 1
      %p170 = por %p168, %p169
      %p172 = scmp.ne.s32.totalorder %s155, %s171
      %p173 = scmp.eq.s32.totalorder %s37, 0
      %p174 = por %p172, %p173
      %s175 = ssub.s32 %s31, %s38
      %p176 = scmp.eq.s32.totalorder %s175, 0
      %s178 = sadd.s32 %s177, 1
      %s179 = scalar_select %p176, %s177, %s178
      %p182 = pneg %p176
      %p183 = scmp.eq.s32.totalorder %s31, 1
      %p184 = por %p182, %p183
      %p185 = scmp.ne.s32.totalorder %s177, %s180
      %p186 = scmp.eq.s32.totalorder %s31, 0
      %p187 = por %p185, %p186
      %p188 = scmp.ne.s32.totalorder %s177, %s180
      %p189 = scmp.eq.s32.totalorder %s36, 1
      %p190 = por %p188, %p189
      %p191 = scmp.ne.s32.totalorder %s180, %s181
      %p192 = scmp.eq.s32.totalorder %s36, 0
      %p193 = por %p191, %p192
      %p194 = scmp.ne.s32.totalorder %s180, %s181
      %p195 = scmp.eq.s32.totalorder %s37, 1
      %p196 = por %p194, %p195
      %p198 = scmp.ne.s32.totalorder %s181, %s197
      %p199 = scmp.eq.s32.totalorder %s37, 0
      %p200 = por %p198, %p199
      %s201 = ssub.s32 %s31, %s38
      %p202 = scmp.eq.s32.totalorder %s201, 0
      %s204 = sadd.s32 %s203, 1
      %s205 = scalar_select %p202, %s203, %s204
      %p208 = pneg %p202
      %p209 = scmp.eq.s32.totalorder %s31, 1
      %p210 = por %p208, %p209
      %p211 = scmp.ne.s32.totalorder %s203, %s206
      %p212 = scmp.eq.s32.totalorder %s31, 0
      %p213 = por %p211, %p212
      %p214 = scmp.ne.s32.totalorder %s203, %s206
      %p215 = scmp.eq.s32.totalorder %s36, 1
      %p216 = por %p214, %p215
      %p217 = scmp.ne.s32.totalorder %s206, %s207
      %p218 = scmp.eq.s32.totalorder %s36, 0
      %p219 = por %p217, %p218
      %p220 = scmp.ne.s32.totalorder %s206, %s207
      %p221 = scmp.eq.s32.totalorder %s37, 1
      %p222 = por %p220, %p221
      %p224 = scmp.ne.s32.totalorder %s207, %s223
      %p225 = scmp.eq.s32.totalorder %s37, 0
      %p226 = por %p224, %p225
      %s227 = ssub.s32 %s31, %s38
      %p228 = scmp.eq.s32.totalorder %s227, 0
      %s230 = sadd.s32 %s229, 1
      %s231 = scalar_select %p228, %s229, %s230
      %p234 = pneg %p228
      %p235 = scmp.eq.s32.totalorder %s31, 1
      %p236 = por %p234, %p235
      %p237 = scmp.ne.s32.totalorder %s229, %s232
      %p238 = scmp.eq.s32.totalorder %s31, 0
      %p239 = por %p237, %p238
      %p240 = scmp.ne.s32.totalorder %s229, %s232
      %p241 = scmp.eq.s32.totalorder %s36, 1
      %p242 = por %p240, %p241
      %p243 = scmp.ne.s32.totalorder %s232, %s233
      %p244 = scmp.eq.s32.totalorder %s36, 0
      %p245 = por %p243, %p244
      %p246 = scmp.ne.s32.totalorder %s232, %s233
      %p247 = scmp.eq.s32.totalorder %s37, 1
      %p248 = por %p246, %p247
      %p250 = scmp.ne.s32.totalorder %s233, %s249
      %p251 = scmp.eq.s32.totalorder %s37, 0
      %p252 = por %p250, %p251
      %s253 = ssub.s32 %s31, %s38
      %p254 = scmp.eq.s32.totalorder %s253, 0
      %s256 = sadd.s32 %s255, 1
      %s257 = scalar_select %p254, %s255, %s256
      %p260 = pneg %p254
      %p261 = scmp.eq.s32.totalorder %s31, 1
      %p262 = por %p260, %p261
      %p263 = scmp.ne.s32.totalorder %s255, %s258
      %p264 = scmp.eq.s32.totalorder %s31, 0
      %p265 = por %p263, %p264
      %p266 = scmp.ne.s32.totalorder %s255, %s258
      %p267 = scmp.eq.s32.totalorder %s36, 1
      %p268 = por %p266, %p267
      %p269 = scmp.ne.s32.totalorder %s258, %s259
      %p270 = scmp.eq.s32.totalorder %s36, 0
      %p271 = por %p269, %p270
      %p272 = scmp.ne.s32.totalorder %s258, %s259
      %p273 = scmp.eq.s32.totalorder %s37, 1
      %p274 = por %p272, %p273
      %p276 = scmp.ne.s32.totalorder %s259, %s275
      %p277 = scmp.eq.s32.totalorder %s37, 0
      %p278 = por %p276, %p277
      %s279 = ssub.s32 %s31, %s38
      %p280 = scmp.eq.s32.totalorder %s279, 0
      %s282 = sadd.s32 %s281, 1
      %s283 = scalar_select %p280, %s281, %s282
      %p286 = pneg %p280
      %p287 = scmp.eq.s32.totalorder %s31, 1
      %p288 = por %p286, %p287
      %p289 = scmp.ne.s32.totalorder %s281, %s284
      %p290 = scmp.eq.s32.totalorder %s31, 0
      %p291 = por %p289, %p290
      %p292 = scmp.ne.s32.totalorder %s281, %s284
      %p293 = scmp.eq.s32.totalorder %s36, 1
      %p294 = por %p292, %p293
      %p295 = scmp.ne.s32.totalorder %s284, %s285
      %p296 = scmp.eq.s32.totalorder %s36, 0
      %p297 = por %p295, %p296
      %p298 = scmp.ne.s32.totalorder %s284, %s285
      %p299 = scmp.eq.s32.totalorder %s37, 1
      %p300 = por %p298, %p299
      %p302 = scmp.ne.s32.totalorder %s285, %s301
      %p303 = scmp.eq.s32.totalorder %s37, 0
      %p304 = por %p302, %p303
      %s305 = ssub.s32 %s31, %s38
      %p306 = scmp.eq.s32.totalorder %s305, 0
      %s308 = sadd.s32 %s307, 1
      %s309 = scalar_select %p306, %s307, %s308
      %p312 = pneg %p306
      %p313 = scmp.eq.s32.totalorder %s31, 1
      %p314 = por %p312, %p313
      %p315 = scmp.ne.s32.totalorder %s307, %s310
      %p316 = scmp.eq.s32.totalorder %s31, 0
      %p317 = por %p315, %p316
      %p318 = scmp.ne.s32.totalorder %s307, %s310
      %p319 = scmp.eq.s32.totalorder %s36, 1
      %p320 = por %p318, %p319
      %p321 = scmp.ne.s32.totalorder %s310, %s311
      %p322 = scmp.eq.s32.totalorder %s36, 0
      %p323 = por %p321, %p322
      %p324 = scmp.ne.s32.totalorder %s310, %s311
      %p325 = scmp.eq.s32.totalorder %s37, 1
      %p326 = por %p324, %p325
      %p328 = scmp.ne.s32.totalorder %s311, %s327
      %p329 = scmp.eq.s32.totalorder %s37, 0
      %p330 = por %p328, %p329
      %s331 = ssub.s32 %s31, %s38
      %p332 = scmp.eq.s32.totalorder %s331, 0
      %s334 = sadd.s32 %s333, 1
      %s335 = scalar_select %p332, %s333, %s334
      %p338 = pneg %p332
      %p339 = scmp.eq.s32.totalorder %s31, 1
      %p340 = por %p338, %p339
      %p341 = scmp.ne.s32.totalorder %s333, %s336
      %p342 = scmp.eq.s32.totalorder %s31, 0
      %p343 = por %p341, %p342
      %p344 = scmp.ne.s32.totalorder %s333, %s336
      %p345 = scmp.eq.s32.totalorder %s36, 1
      %p346 = por %p344, %p345
      %p347 = scmp.ne.s32.totalorder %s336, %s337
      %p348 = scmp.eq.s32.totalorder %s36, 0
      %p349 = por %p347, %p348
      %p350 = scmp.ne.s32.totalorder %s336, %s337
      %p351 = scmp.eq.s32.totalorder %s37, 1
      %p352 = por %p350, %p351
      %p354 = scmp.ne.s32.totalorder %s337, %s353
      %p355 = scmp.eq.s32.totalorder %s37, 0
      %p356 = por %p354, %p355
      %s357 = ssub.s32 %s31, %s38
      %p358 = scmp.eq.s32.totalorder %s357, 0
      %s360 = sadd.s32 %s359, 1
      %s361 = scalar_select %p358, %s359, %s360
      %p364 = pneg %p358
      %p365 = scmp.eq.s32.totalorder %s31, 1
      %p366 = por %p364, %p365
      %p367 = scmp.ne.s32.totalorder %s359, %s362
      %p368 = scmp.eq.s32.totalorder %s31, 0
      %p369 = por %p367, %p368
      %p370 = scmp.ne.s32.totalorder %s359, %s362
      %p371 = scmp.eq.s32.totalorder %s36, 1
      %p372 = por %p370, %p371
      %p373 = scmp.ne.s32.totalorder %s362, %s363
      %p374 = scmp.eq.s32.totalorder %s36, 0
      %p375 = por %p373, %p374
      %p376 = scmp.ne.s32.totalorder %s362, %s363
      %p377 = scmp.eq.s32.totalorder %s37, 1
      %p378 = por %p376, %p377
      %p380 = scmp.ne.s32.totalorder %s363, %s379
      %p381 = scmp.eq.s32.totalorder %s37, 0
      %p382 = por %p380, %p381
      %s383 = ssub.s32 %s31, %s38
      %p384 = scmp.eq.s32.totalorder %s383, 0
      %s386 = sadd.s32 %s385, 1
      %s387 = scalar_select %p384, %s385, %s386
      %p390 = pneg %p384
      %p391 = scmp.eq.s32.totalorder %s31, 1
      %p392 = por %p390, %p391
      %p393 = scmp.ne.s32.totalorder %s385, %s388
      %p394 = scmp.eq.s32.totalorder %s31, 0
      %p395 = por %p393, %p394
      %p396 = scmp.ne.s32.totalorder %s385, %s388
      %p397 = scmp.eq.s32.totalorder %s36, 1
      %p398 = por %p396, %p397
      %p399 = scmp.ne.s32.totalorder %s388, %s389
      %p400 = scmp.eq.s32.totalorder %s36, 0
      %p401 = por %p399, %p400
      %p402 = scmp.ne.s32.totalorder %s388, %s389
      %p403 = scmp.eq.s32.totalorder %s37, 1
      %p404 = por %p402, %p403
      %p406 = scmp.ne.s32.totalorder %s389, %s405
      %p407 = scmp.eq.s32.totalorder %s37, 0
      %p408 = por %p406, %p407
      %s409 = ssub.s32 %s31, %s38
      %p410 = scmp.eq.s32.totalorder %s409, 0
      %s412 = sadd.s32 %s411, 1
      %s413 = scalar_select %p410, %s411, %s412
      %p416 = pneg %p410
      %p417 = scmp.eq.s32.totalorder %s31, 1
      %p418 = por %p416, %p417
      %p419 = scmp.ne.s32.totalorder %s411, %s414
      %p420 = scmp.eq.s32.totalorder %s31, 0
      %p421 = por %p419, %p420
      %p422 = scmp.ne.s32.totalorder %s411, %s414
      %p423 = scmp.eq.s32.totalorder %s36, 1
      %p424 = por %p422, %p423
      %p425 = scmp.ne.s32.totalorder %s414, %s415
      %p426 = scmp.eq.s32.totalorder %s36, 0
      %p427 = por %p425, %p426
      %p428 = scmp.ne.s32.totalorder %s414, %s415
      %p429 = scmp.eq.s32.totalorder %s37, 1
      %p430 = por %p428, %p429
      %p432 = scmp.ne.s32.totalorder %s415, %s431
      %p433 = scmp.eq.s32.totalorder %s37, 0
      %p434 = por %p432, %p433
      %s436 = sadd.s32 %s435, 1
      %p439 = scmp.eq.s32.totalorder %s31, 1
      %p440 = scmp.ne.s32.totalorder %s435, %s437
      %p441 = scmp.eq.s32.totalorder %s31, 0
      %p442 = por %p440, %p441
      %p443 = scmp.ne.s32.totalorder %s435, %s437
      %p444 = scmp.eq.s32.totalorder %s36, 1
      %p445 = por %p443, %p444
      %p446 = scmp.ne.s32.totalorder %s437, %s438
      %p447 = scmp.eq.s32.totalorder %s36, 0
      %p448 = por %p446, %p447
      %p449 = scmp.ne.s32.totalorder %s437, %s438
      %p450 = scmp.eq.s32.totalorder %s37, 1
      %p451 = por %p449, %p450
      %p453 = scmp.ne.s32.totalorder %s438, %s452
      %p454 = scmp.eq.s32.totalorder %s37, 0
      %p455 = por %p453, %p454
      %s457 = sadd.s32 %s456, 1
      %p460 = scmp.eq.s32.totalorder %s31, 1
      %p461 = scmp.ne.s32.totalorder %s456, %s458
      %p462 = scmp.eq.s32.totalorder %s31, 0
      %p463 = por %p461, %p462
      %p464 = scmp.ne.s32.totalorder %s456, %s458
      %p465 = scmp.eq.s32.totalorder %s36, 1
      %p466 = por %p464, %p465
      %p467 = scmp.ne.s32.totalorder %s458, %s459
      %p468 = scmp.eq.s32.totalorder %s36, 0
      %p469 = por %p467, %p468
      %p470 = scmp.ne.s32.totalorder %s458, %s459
      %p471 = scmp.eq.s32.totalorder %s37, 1
      %p472 = por %p470, %p471
      %p474 = scmp.ne.s32.totalorder %s459, %s473
      %p475 = scmp.eq.s32.totalorder %s37, 0
      %p476 = por %p474, %p475
      %s478 = sadd.s32 %s477, 1
      %p481 = scmp.eq.s32.totalorder %s31, 1
      %p482 = scmp.ne.s32.totalorder %s477, %s479
      %p483 = scmp.eq.s32.totalorder %s31, 0
      %p484 = por %p482, %p483
      %p485 = scmp.ne.s32.totalorder %s477, %s479
      %p486 = scmp.eq.s32.totalorder %s36, 1
      %p487 = por %p485, %p486
      %p488 = scmp.ne.s32.totalorder %s479, %s480
      %p489 = scmp.eq.s32.totalorder %s36, 0
      %p490 = por %p488, %p489
      %p491 = scmp.ne.s32.totalorder %s479, %s480
      %p492 = scmp.eq.s32.totalorder %s37, 1
      %p493 = por %p491, %p492
      %p495 = scmp.ne.s32.totalorder %s480, %s494
      %p496 = scmp.eq.s32.totalorder %s37, 0
      %p497 = por %p495, %p496
      %p498 = scmp.le.s32.totalorder 1, %s31
      %p499 = scmp.lt.s32.totalorder %s31, 3
      %p500 = pnand %p498, %p499
      %p501 = pneg %p500
      // Predicated region
      $region9: #{small_transformer_lm_forward.1} parent=5 // pred_check
        _
      $region10: #{small_transformer_lm_forward.1} parent=5 // pred_check_branch
        %503 = sbr.rel (%p500) target = $region12
      $region11: #{small_transformer_lm_forward.1} parent=5 // pred_region
        %s504 = ssub.s32 %s31, 1
        // Predicated region
        $region13: #{small_transformer_lm_forward.1} parent=11 // pred_check
          %p505 = pneg %p52
        $region14: #{small_transformer_lm_forward.1} parent=11 // pred_check_branch
          %507 = sbr.rel (%p505) target = $region16
        $region15: #{small_transformer_lm_forward.1} parent=11 // pred_region
          _
        $region16: #{small_transformer_lm_forward.1} parent=11 // pred_fallthru
          _
        // Predicated region
        $region17: #{small_transformer_lm_forward.1} parent=11 // pred_check
          %p508 = pneg %p73
        $region18: #{small_transformer_lm_forward.1} parent=11 // pred_check_branch
          %510 = sbr.rel (%p508) target = $region20
        $region19: #{small_transformer_lm_forward.1} parent=11 // pred_region
          _
        $region20: #{small_transformer_lm_forward.1} parent=11 // pred_fallthru
          _
        // Predicated region
        $region21: #{small_transformer_lm_forward.1} parent=11 // pred_check
          %p511 = pneg %p94
        $region22: #{small_transformer_lm_forward.1} parent=11 // pred_check_branch
          %513 = sbr.rel (%p511) target = $region24
        $region23: #{small_transformer_lm_forward.1} parent=11 // pred_region
          _
        $region24: #{small_transformer_lm_forward.1} parent=11 // pred_fallthru
          _
        // Predicated region
        $region25: #{small_transformer_lm_forward.1} parent=11 // pred_check
          %p514 = pneg %p115
        $region26: #{small_transformer_lm_forward.1} parent=11 // pred_check_branch
          %516 = sbr.rel (%p514) target = $region28
        $region27: #{small_transformer_lm_forward.1} parent=11 // pred_region
          _
        $region28: #{small_transformer_lm_forward.1} parent=11 // pred_fallthru
          _
        // Predicated region
        $region29: #{small_transformer_lm_forward.1} parent=11 // pred_check
          %p517 = pneg %p448
        $region30: #{small_transformer_lm_forward.1} parent=11 // pred_check_branch
          %519 = sbr.rel (%p517) target = $region32
        $region31: #{small_transformer_lm_forward.1} parent=11 // pred_region
          _
        $region32: #{small_transformer_lm_forward.1} parent=11 // pred_fallthru
          _
        // Predicated region
        $region33: #{small_transformer_lm_forward.1} parent=11 // pred_check
          %p520 = pneg %p469
        $region34: #{small_transformer_lm_forward.1} parent=11 // pred_check_branch
          %522 = sbr.rel (%p520) target = $region36
        $region35: #{small_transformer_lm_forward.1} parent=11 // pred_region
          _
        $region36: #{small_transformer_lm_forward.1} parent=11 // pred_fallthru
          _
      $region12: #{small_transformer_lm_forward.1} parent=5 // pred_fallthru
        _
      %p523 = scmp.lt.s32.totalorder %s31, 2
      // Predicated region
      $region37: #{small_transformer_lm_forward.1} parent=5 // pred_check
        %p524 = pneg %p523
      $region38: #{small_transformer_lm_forward.1} parent=5 // pred_check_branch
        %526 = sbr.rel (%p524) target = $region40
      $region39: #{small_transformer_lm_forward.1} parent=5 // pred_region
        // Predicated region
        $region41: #{small_transformer_lm_forward.1} parent=39 // pred_check
          %p527 = pneg %p135
        $region42: #{small_transformer_lm_forward.1} parent=39 // pred_check_branch
          %529 = sbr.rel (%p527) target = $region44
        $region43: #{small_transformer_lm_forward.1} parent=39 // pred_region
          %s530 = sand.u32 %s125, 1
          %s531 = scalar_lea.sflag [#allocation4], %s530
          %s532 = sand.u32 %s125, 1
          %s533 = smul.addr %s532, 192
          %s534 = scalar_lea.vmem [#allocation3], %s533
          %536 = vsyncadd %s531, 0
          %s537 = smul.addr %s31, 48
          %s538 = smul.addr %s537, 4
          %s539 = scalar_lea.hbm %s4, %s538
          %s540 = sshll.u32 %s539, 4
          %s541 = int_to_ptr.hbm [resolvable:$true] %s540
          %s542 = sshll.u32 %s534, 4
          %s543 = int_to_ptr.vmem [resolvable:$true] %s542
          %548 = dma.hbm_to_vmem [thread:$0]  %s541, 3072, %s543, %s531, 192, 192, 12
        $region44: #{small_transformer_lm_forward.1} parent=39 // pred_fallthru
          _
        // Predicated region
        $region45: #{small_transformer_lm_forward.1} parent=39 // pred_check
          %p549 = pneg %p161
        $region46: #{small_transformer_lm_forward.1} parent=39 // pred_check_branch
          %551 = sbr.rel (%p549) target = $region48
        $region47: #{small_transformer_lm_forward.1} parent=39 // pred_region
          %p552 = scmp.lt.s32.totalorder %s31, 1
          %s553 = scalar_select %p552, %s31, 1
          %s554 = smul.addr %s553, 3
          %s555 = scalar_lea.vmem %s5, %s554
        $region48: #{small_transformer_lm_forward.1} parent=39 // pred_fallthru
          _
        // Predicated region
        $region49: #{small_transformer_lm_forward.1} parent=39 // pred_check
          %p556 = pneg %p187
        $region50: #{small_transformer_lm_forward.1} parent=39 // pred_check_branch
          %558 = sbr.rel (%p556) target = $region52
        $region51: #{small_transformer_lm_forward.1} parent=39 // pred_region
          %p559 = scmp.lt.s32.totalorder %s31, 1
          %s560 = scalar_select %p559, %s31, 1
          %s561 = smul.addr %s560, 16
          %s562 = smul.addr %s561, 4
          %s563 = scalar_lea.vmem %s6, %s562
        $region52: #{small_transformer_lm_forward.1} parent=39 // pred_fallthru
          _
        // Predicated region
        $region53: #{small_transformer_lm_forward.1} parent=39 // pred_check
          %p564 = pneg %p213
        $region54: #{small_transformer_lm_forward.1} parent=39 // pred_check_branch
          %566 = sbr.rel (%p564) target = $region56
        $region55: #{small_transformer_lm_forward.1} parent=39 // pred_region
          %p567 = scmp.lt.s32.totalorder %s31, 1
          %s568 = scalar_select %p567, %s31, 1
          %s569 = scalar_lea.vmem %s7, %s568
        $region56: #{small_transformer_lm_forward.1} parent=39 // pred_fallthru
          _
        // Predicated region
        $region57: #{small_transformer_lm_forward.1} parent=39 // pred_check
          %p570 = pneg %p239
        $region58: #{small_transformer_lm_forward.1} parent=39 // pred_check_branch
          %572 = sbr.rel (%p570) target = $region60
        $region59: #{small_transformer_lm_forward.1} parent=39 // pred_region
          %p573 = scmp.lt.s32.totalorder %s31, 1
          %s574 = scalar_select %p573, %s31, 1
          %s575 = scalar_lea.vmem %s8, %s574
        $region60: #{small_transformer_lm_forward.1} parent=39 // pred_fallthru
          _
        // Predicated region
        $region61: #{small_transformer_lm_forward.1} parent=39 // pred_check
          %p576 = pneg %p265
        $region62: #{small_transformer_lm_forward.1} parent=39 // pred_check_branch
          %578 = sbr.rel (%p576) target = $region64
        $region63: #{small_transformer_lm_forward.1} parent=39 // pred_region
          %p579 = scmp.lt.s32.totalorder %s31, 1
          %s580 = scalar_select %p579, %s31, 1
          %s581 = scalar_lea.vmem %s9, %s580
        $region64: #{small_transformer_lm_forward.1} parent=39 // pred_fallthru
          _
        // Predicated region
        $region65: #{small_transformer_lm_forward.1} parent=39 // pred_check
          %p582 = pneg %p291
        $region66: #{small_transformer_lm_forward.1} parent=39 // pred_check_branch
          %584 = sbr.rel (%p582) target = $region68
        $region67: #{small_transformer_lm_forward.1} parent=39 // pred_region
          %s585 = sand.u32 %s31, 1
          %s586 = scalar_lea.sflag [#allocation7], %s585
          %s587 = sand.u32 %s281, 1
          %s588 = smul.addr %s587, 256
          %s589 = scalar_lea.vmem [#allocation6], %s588
          %591 = vsyncadd %s586, 0
          %s592 = smul.addr %s31, 64
          %s593 = smul.addr %s592, 4
          %s594 = scalar_lea.hbm %s10, %s593
          %s595 = sshll.u32 %s594, 4
          %s596 = int_to_ptr.hbm [resolvable:$true] %s595
          %s597 = sshll.u32 %s589, 4
          %s598 = int_to_ptr.vmem [resolvable:$true] %s597
          %603 = dma.hbm_to_vmem [thread:$0]  %s596, 4096, %s598, %s586, 256, 256, 16
        $region68: #{small_transformer_lm_forward.1} parent=39 // pred_fallthru
          _
        // Predicated region
        $region69: #{small_transformer_lm_forward.1} parent=39 // pred_check
          %p604 = pneg %p317
        $region70: #{small_transformer_lm_forward.1} parent=39 // pred_check_branch
          %606 = sbr.rel (%p604) target = $region72
        $region71: #{small_transformer_lm_forward.1} parent=39 // pred_region
          %p607 = scmp.lt.s32.totalorder %s31, 1
          %s608 = scalar_select %p607, %s31, 1
          %s609 = smul.addr %s608, 4
          %s610 = scalar_lea.vmem %s11, %s609
        $region72: #{small_transformer_lm_forward.1} parent=39 // pred_fallthru
          _
        // Predicated region
        $region73: #{small_transformer_lm_forward.1} parent=39 // pred_check
          %p611 = pneg %p343
        $region74: #{small_transformer_lm_forward.1} parent=39 // pred_check_branch
          %613 = sbr.rel (%p611) target = $region76
        $region75: #{small_transformer_lm_forward.1} parent=39 // pred_region
          %s614 = sand.u32 %s31, 1
          %s615 = scalar_lea.sflag [#allocation7], %s614
          %s616 = sand.u32 %s333, 1
          %s617 = smul.addr %s616, 256
          %s618 = scalar_lea.vmem [#allocation8], %s617
          %620 = vsyncadd %s615, 0
          %s621 = smul.addr %s31, 64
          %s622 = smul.addr %s621, 4
          %s623 = scalar_lea.hbm %s12, %s622
          %s624 = sshll.u32 %s623, 4
          %s625 = int_to_ptr.hbm [resolvable:$true] %s624
          %s626 = sshll.u32 %s618, 4
          %s627 = int_to_ptr.vmem [resolvable:$true] %s626
          %632 = dma.hbm_to_vmem [thread:$0]  %s625, 4096, %s627, %s615, 64, 64, 4
        $region76: #{small_transformer_lm_forward.1} parent=39 // pred_fallthru
          _
        // Predicated region
        $region77: #{small_transformer_lm_forward.1} parent=39 // pred_check
          %p633 = pneg %p369
        $region78: #{small_transformer_lm_forward.1} parent=39 // pred_check_branch
          %635 = sbr.rel (%p633) target = $region80
        $region79: #{small_transformer_lm_forward.1} parent=39 // pred_region
          %p636 = scmp.lt.s32.totalorder %s31, 1
          %s637 = scalar_select %p636, %s31, 1
          %s638 = scalar_lea.vmem %s13, %s637
        $region80: #{small_transformer_lm_forward.1} parent=39 // pred_fallthru
          _
        // Predicated region
        $region81: #{small_transformer_lm_forward.1} parent=39 // pred_check
          %p639 = pneg %p395
        $region82: #{small_transformer_lm_forward.1} parent=39 // pred_check_branch
          %641 = sbr.rel (%p639) target = $region84
        $region83: #{small_transformer_lm_forward.1} parent=39 // pred_region
          %p642 = scmp.lt.s32.totalorder %s31, 1
          %s643 = scalar_select %p642, %s31, 1
          %s644 = scalar_lea.vmem %s14, %s643
        $region84: #{small_transformer_lm_forward.1} parent=39 // pred_fallthru
          _
        // Predicated region
        $region85: #{small_transformer_lm_forward.1} parent=39 // pred_check
          %p645 = pneg %p421
        $region86: #{small_transformer_lm_forward.1} parent=39 // pred_check_branch
          %647 = sbr.rel (%p645) target = $region88
        $region87: #{small_transformer_lm_forward.1} parent=39 // pred_region
          %p648 = scmp.lt.s32.totalorder %s31, 1
          %s649 = scalar_select %p648, %s31, 1
          %s650 = scalar_lea.vmem %s15, %s649
        $region88: #{small_transformer_lm_forward.1} parent=39 // pred_fallthru
          _
      $region40: #{small_transformer_lm_forward.1} parent=5 // pred_fallthru
        _
      %p651 = scmp.le.s32.totalorder 1, %s31
      %p652 = scmp.lt.s32.totalorder %s31, 3
      %p653 = pnand %p651, %p652
      %p654 = pneg %p653
      // Predicated region
      $region89: #{small_transformer_lm_forward.1} parent=5 // pred_check
        _
      $region90: #{small_transformer_lm_forward.1} parent=5 // pred_check_branch
        %656 = sbr.rel (%p653) target = $region92
      $region91: #{small_transformer_lm_forward.1} parent=5 // pred_region
        %s657 = ssub.s32 %s31, 1
        %s658 = sand.u32 %s128, 1
        %s659 = scalar_lea.sflag [#allocation4], %s658
        %s660 = sand.u32 %s128, 1
        %s661 = smul.addr %s660, 192
        %s662 = scalar_lea.vmem [#allocation3], %s661
        // Predicated region
        $region93: #{small_transformer_lm_forward.1} parent=91 // pred_check
          %p663 = pneg %p141
        $region94: #{small_transformer_lm_forward.1} parent=91 // pred_check_branch
          %665 = sbr.rel (%p663) target = $region96
        $region95: #{small_transformer_lm_forward.1} parent=91 // pred_region
          %667 = dma.done %s659, 3072
        $region96: #{small_transformer_lm_forward.1} parent=91 // pred_fallthru
          _
        %s668 = sand.u32 %s36, 1
        %s669 = scalar_lea.sflag [#allocation7], %s668
        %s670 = sand.u32 %s284, 1
        %s671 = smul.addr %s670, 256
        %s672 = scalar_lea.vmem [#allocation6], %s671
        // Predicated region
        $region97: #{small_transformer_lm_forward.1} parent=91 // pred_check
          %p673 = pneg %p297
        $region98: #{small_transformer_lm_forward.1} parent=91 // pred_check_branch
          %675 = sbr.rel (%p673) target = $region100
        $region99: #{small_transformer_lm_forward.1} parent=91 // pred_region
          %677 = dma.done %s669, 4096
        $region100: #{small_transformer_lm_forward.1} parent=91 // pred_fallthru
          _
        %s678 = sand.u32 %s36, 1
        %s679 = scalar_lea.sflag [#allocation7], %s678
        %s680 = sand.u32 %s336, 1
        %s681 = smul.addr %s680, 256
        %s682 = scalar_lea.vmem [#allocation8], %s681
        // Predicated region
        $region101: #{small_transformer_lm_forward.1} parent=91 // pred_check
          %p683 = pneg %p349
        $region102: #{small_transformer_lm_forward.1} parent=91 // pred_check_branch
          %685 = sbr.rel (%p683) target = $region104
        $region103: #{small_transformer_lm_forward.1} parent=91 // pred_region
          %687 = dma.done %s679, 4096
        $region104: #{small_transformer_lm_forward.1} parent=91 // pred_fallthru
          _
        %p688 = pneg %p52
        %p689 = pneg %p49
        %p690 = pneg %p73
        %p691 = pneg %p70
        %p692 = pneg %p94
        %p693 = pneg %p91
        %p694 = pneg %p115
        %p695 = pneg %p112
        %s696 = sand.u32 %s128, 1
        %s697 = scalar_lea.sflag [#allocation4], %s696
        %s698 = sand.u32 %s128, 1
        %s699 = smul.addr %s698, 192
        %s700 = scalar_lea.vmem [#allocation3], %s699
        %p701 = pneg %p141
        %p702 = pneg %p138
        %p703 = scmp.lt.s32.totalorder %s36, 1
        %s704 = scalar_select %p703, %s36, 1
        %s705 = smul.addr %s704, 3
        %s706 = scalar_lea.vmem %s5, %s705
        %p707 = pneg %p167
        %p708 = pneg %p164
        %p709 = scmp.lt.s32.totalorder %s36, 1
        %s710 = scalar_select %p709, %s36, 1
        %s711 = smul.addr %s710, 16
        %s712 = smul.addr %s711, 4
        %s713 = scalar_lea.vmem %s6, %s712
        %p714 = pneg %p193
        %p715 = pneg %p190
        %p716 = scmp.lt.s32.totalorder %s36, 1
        %s717 = scalar_select %p716, %s36, 1
        %s718 = scalar_lea.vmem %s7, %s717
        %p719 = pneg %p219
        %p720 = pneg %p216
        %p721 = scmp.lt.s32.totalorder %s36, 1
        %s722 = scalar_select %p721, %s36, 1
        %s723 = scalar_lea.vmem %s8, %s722
        %p724 = pneg %p245
        %p725 = pneg %p242
        %p726 = scmp.lt.s32.totalorder %s36, 1
        %s727 = scalar_select %p726, %s36, 1
        %s728 = scalar_lea.vmem %s9, %s727
        %p729 = pneg %p271
        %p730 = pneg %p268
        %s731 = sand.u32 %s36, 1
        %s732 = scalar_lea.sflag [#allocation7], %s731
        %s733 = sand.u32 %s284, 1
        %s734 = smul.addr %s733, 256
        %s735 = scalar_lea.vmem [#allocation6], %s734
        %p736 = pneg %p297
        %p737 = pneg %p294
        %p738 = scmp.lt.s32.totalorder %s36, 1
        %s739 = scalar_select %p738, %s36, 1
        %s740 = smul.addr %s739, 4
        %s741 = scalar_lea.vmem %s11, %s740
        %p742 = pneg %p323
        %p743 = pneg %p320
        %s744 = sand.u32 %s36, 1
        %s745 = scalar_lea.sflag [#allocation7], %s744
        %s746 = sand.u32 %s336, 1
        %s747 = smul.addr %s746, 256
        %s748 = scalar_lea.vmem [#allocation8], %s747
        %p749 = pneg %p349
        %p750 = pneg %p346
        %p751 = scmp.lt.s32.totalorder %s36, 1
        %s752 = scalar_select %p751, %s36, 1
        %s753 = scalar_lea.vmem %s13, %s752
        %p754 = pneg %p375
        %p755 = pneg %p372
        %p756 = scmp.lt.s32.totalorder %s36, 1
        %s757 = scalar_select %p756, %s36, 1
        %s758 = scalar_lea.vmem %s14, %s757
        %p759 = pneg %p401
        %p760 = pneg %p398
        %p761 = scmp.lt.s32.totalorder %s36, 1
        %s762 = scalar_select %p761, %s36, 1
        %s763 = scalar_lea.vmem %s15, %s762
        %p764 = pneg %p427
        %p765 = pneg %p424
        %p766 = pneg %p448
        %p767 = pneg %p445
        %p768 = pneg %p469
        %p769 = pneg %p466
        %p770 = pneg %p490
        %p771 = pneg %p487
        %p772 = scmp.lt.s32.totalorder %s36, 1
        %s773 = scalar_select %p772, %s36, 1
        %s774 = smul.addr %s773, 3
        %s775 = scalar_lea.vmem %s5, %s774
        %p776 = scmp.lt.s32.totalorder %s36, 1
        %s777 = scalar_select %p776, %s36, 1
        %s778 = smul.addr %s777, 16
        %s779 = smul.addr %s778, 4
        %s780 = scalar_lea.vmem %s6, %s779
        %p781 = scmp.lt.s32.totalorder %s36, 1
        %s782 = scalar_select %p781, %s36, 1
        %s783 = scalar_lea.vmem %s7, %s782
        %p784 = scmp.lt.s32.totalorder %s36, 1
        %s785 = scalar_select %p784, %s36, 1
        %s786 = scalar_lea.vmem %s8, %s785
        %p787 = scmp.lt.s32.totalorder %s36, 1
        %s788 = scalar_select %p787, %s36, 1
        %s789 = scalar_lea.vmem %s9, %s788
        %p790 = scmp.lt.s32.totalorder %s36, 1
        %s791 = scalar_select %p790, %s36, 1
        %s792 = smul.addr %s791, 4
        %s793 = scalar_lea.vmem %s11, %s792
        %p794 = scmp.lt.s32.totalorder %s36, 1
        %s795 = scalar_select %p794, %s36, 1
        %s796 = scalar_lea.vmem %s13, %s795
        %p797 = scmp.lt.s32.totalorder %s36, 1
        %s798 = scalar_select %p797, %s36, 1
        %s799 = scalar_lea.vmem %s14, %s798
        %p800 = scmp.lt.s32.totalorder %s36, 1
        %s801 = scalar_select %p800, %s36, 1
        %s802 = scalar_lea.vmem %s15, %s801
        %p804 = scmp.eq.s32.totalorder %s36, 0
        // Predicated region
        $region105: #{small_transformer_lm_forward.1} parent=91 // pred_check
          %p805 = pneg %p804
        $region106: #{small_transformer_lm_forward.1} parent=91 // pred_check_branch
          %807 = sbr.rel (%p805) target = $region108
        $region107: #{small_transformer_lm_forward.1} parent=91 // pred_region
          %v808 = vld [vmem:[%s0] sm:$0xff]
          %v809 = vld [vmem:[%s0 + $0x8] sm:$0xff]
          %810 = vst [vmem:[#allocation2] sm:$0xff] %v808
          %811 = vst [vmem:[#allocation2 + $0x8] sm:$0xff] %v809
        $region108: #{small_transformer_lm_forward.1} parent=91 // pred_fallthru
          _
        %v812 = vld [vmem:[#allocation2] sm:$0xff]
        %v813 = vld [vmem:[#allocation2 + $0x8] sm:$0xff]
        %v814 = vpack.c.bf16 %v813, %v812
        %v815 = vld [vmem:[%s662] sm:$0xff]
        %v816 = vld [vmem:[%s662 + $0x8] sm:$0xf]
        %v817 = vld [vmem:[%s662 + $0xc] sm:$0xff]
        %v818 = vld [vmem:[%s662 + $0x14] sm:$0xf]
        %v819 = vld [vmem:[%s662 + $0x18] sm:$0xff]
        %v820 = vld [vmem:[%s662 + $0x20] sm:$0xf]
        %v821 = vld [vmem:[%s662 + $0x24] sm:$0xff]
        %v822 = vld [vmem:[%s662 + $0x2c] sm:$0xf]
        %v823 = vld [vmem:[%s662 + $0x30] sm:$0xff]
        %v824 = vld [vmem:[%s662 + $0x38] sm:$0xf]
        %v825 = vld [vmem:[%s662 + $0x3c] sm:$0xff]
        %v826 = vld [vmem:[%s662 + $0x44] sm:$0xf]
        %v827 = vld [vmem:[%s662 + $0x48] sm:$0xff]
        %v828 = vld [vmem:[%s662 + $0x50] sm:$0xf]
        %v829 = vld [vmem:[%s662 + $0x54] sm:$0xff]
        %v830 = vld [vmem:[%s662 + $0x5c] sm:$0xf]
        %v831 = vld [vmem:[%s662 + $0x60] sm:$0xff]
        %v832 = vld [vmem:[%s662 + $0x68] sm:$0xf]
        %v833 = vld [vmem:[%s662 + $0x6c] sm:$0xff]
        %v834 = vld [vmem:[%s662 + $0x74] sm:$0xf]
        %v835 = vld [vmem:[%s662 + $0x78] sm:$0xff]
        %v836 = vld [vmem:[%s662 + $0x80] sm:$0xf]
        %v837 = vld [vmem:[%s662 + $0x84] sm:$0xff]
        %v838 = vld [vmem:[%s662 + $0x8c] sm:$0xf]
        %v839 = vld [vmem:[%s662 + $0x90] sm:$0xff]
        %v840 = vld [vmem:[%s662 + $0x98] sm:$0xf]
        %v841 = vld [vmem:[%s662 + $0x9c] sm:$0xff]
        %v842 = vld [vmem:[%s662 + $0xa4] sm:$0xf]
        %v843 = vld [vmem:[%s662 + $0xa8] sm:$0xff]
        %v844 = vld [vmem:[%s662 + $0xb0] sm:$0xf]
        %v845 = vld [vmem:[%s662 + $0xb4] sm:$0xff]
        %v846 = vld [vmem:[%s662 + $0xbc] sm:$0xf]
        %v847 = vld [vmem:[%s775] sm:$0x7]
        %v849 = vperm.slane %v847, 0
        %v850 = vperm.slane %v847, 1
        %v851 = vperm.slane %v847, 2
        %v887 = vunpack.c.l.b16 %v815
        %v888 = vunpack.c.h.b16 %v815
        %v889 = vunpack.c.l.b16 %v816
        %v890 = vunpack.c.l.b16 %v817
        %v891 = vunpack.c.h.b16 %v817
        %v892 = vunpack.c.l.b16 %v818
        %v893 = vunpack.c.l.b16 %v819
        %v894 = vunpack.c.h.b16 %v819
        %v895 = vunpack.c.l.b16 %v820
        %v896 = vunpack.c.l.b16 %v821
        %v897 = vunpack.c.h.b16 %v821
        %v898 = vunpack.c.l.b16 %v822
        %v899 = vunpack.c.l.b16 %v823
        %v900 = vunpack.c.h.b16 %v823
        %v901 = vunpack.c.l.b16 %v824
        %v902 = vunpack.c.l.b16 %v825
        %v903 = vunpack.c.h.b16 %v825
        %v904 = vunpack.c.l.b16 %v826
        %v905 = vunpack.c.l.b16 %v827
        %v906 = vunpack.c.h.b16 %v827
        %v907 = vunpack.c.l.b16 %v828
        %v908 = vunpack.c.l.b16 %v829
        %v909 = vunpack.c.h.b16 %v829
        %v910 = vunpack.c.l.b16 %v830
        %v911 = vunpack.c.l.b16 %v831
        %v912 = vunpack.c.h.b16 %v831
        %v913 = vunpack.c.l.b16 %v832
        %v914 = vunpack.c.l.b16 %v833
        %v915 = vunpack.c.h.b16 %v833
        %v916 = vunpack.c.l.b16 %v834
        %v917 = vunpack.c.l.b16 %v835
        %v918 = vunpack.c.h.b16 %v835
        %v919 = vunpack.c.l.b16 %v836
        %v920 = vunpack.c.l.b16 %v837
        %v921 = vunpack.c.h.b16 %v837
        %v922 = vunpack.c.l.b16 %v838
        %v923 = vunpack.c.l.b16 %v839
        %v924 = vunpack.c.h.b16 %v839
        %v925 = vunpack.c.l.b16 %v840
        %v926 = vunpack.c.l.b16 %v841
        %v927 = vunpack.c.h.b16 %v841
        %v928 = vunpack.c.l.b16 %v842
        %v929 = vunpack.c.l.b16 %v843
        %v930 = vunpack.c.h.b16 %v843
        %v931 = vunpack.c.l.b16 %v844
        %v932 = vunpack.c.l.b16 %v845
        %v933 = vunpack.c.h.b16 %v845
        %v934 = vunpack.c.l.b16 %v846
        %v935 = vpack.c.b16 %v890, %v887
        %v936 = vpack.c.b16 %v891, %v888
        %v937 = vpack.c.b16 %v892, %v889
        %v938 = vpack.c.b16 %v896, %v893
        %v939 = vpack.c.b16 %v897, %v894
        %v940 = vpack.c.b16 %v898, %v895
        %v941 = vpack.c.b16 %v902, %v899
        %v942 = vpack.c.b16 %v903, %v900
        %v943 = vpack.c.b16 %v904, %v901
        %v944 = vpack.c.b16 %v908, %v905
        %v945 = vpack.c.b16 %v909, %v906
        %v946 = vpack.c.b16 %v910, %v907
        %v947 = vpack.c.b16 %v914, %v911
        %v948 = vpack.c.b16 %v915, %v912
        %v949 = vpack.c.b16 %v916, %v913
        %v950 = vpack.c.b16 %v920, %v917
        %v951 = vpack.c.b16 %v921, %v918
        %v952 = vpack.c.b16 %v922, %v919
        %v953 = vpack.c.b16 %v926, %v923
        %v954 = vpack.c.b16 %v927, %v924
        %v955 = vpack.c.b16 %v928, %v925
        %v956 = vpack.c.b16 %v932, %v929
        %v957 = vpack.c.b16 %v933, %v930
        %v958 = vpack.c.b16 %v934, %v931
        %983 = vmatpush.bf16.msra.mxu0 %v956
        %984 = vmatpush.bf16.msra.mxu0 %v953
        %985 = vmatpush.bf16.msra.mxu0 %v950
        %986 = vmatpush.bf16.msra.mxu0 %v947
        %987 = vmatpush.bf16.msra.mxu0 %v944
        %988 = vmatpush.bf16.msra.mxu0 %v941
        %989 = vmatpush.bf16.msra.mxu0 %v938
        %990 = vmatpush.bf16.msra.mxu0 %v935
        %991 = vmatmul.bf16.gmra.mxu0 %v814
        %v992 = vpop.f32.mrf.mxu0
        %v993 = vadd.f32 %v849, %v992
        %v994 = vpop.f32.mrf.mxu0
        %v995 = vadd.f32 %v849, %v994
        %996 = vdwg.mxu0
        %997 = vmatpush.bf16.msra.mxu0 %v957
        %998 = vmatpush.bf16.msra.mxu0 %v954
        %999 = vmatpush.bf16.msra.mxu0 %v951
        %1000 = vmatpush.bf16.msra.mxu0 %v948
        %1001 = vmatpush.bf16.msra.mxu0 %v945
        %1002 = vmatpush.bf16.msra.mxu0 %v942
        %1003 = vmatpush.bf16.msra.mxu0 %v939
        %1004 = vmatpush.bf16.msra.mxu0 %v936
        %1005 = vmatmul.bf16.gmra.mxu0 %v814
        %v1006 = vpop.f32.mrf.mxu0
        %v1007 = vadd.f32 %v850, %v1006
        %v1008 = vpop.f32.mrf.mxu0
        %v1009 = vadd.f32 %v850, %v1008
        %1010 = vdwg.mxu0
        %1011 = vmatpush.bf16.msra.mxu0 %v958
        %1012 = vmatpush.bf16.msra.mxu0 %v955
        %1013 = vmatpush.bf16.msra.mxu0 %v952
        %1014 = vmatpush.bf16.msra.mxu0 %v949
        %1015 = vmatpush.bf16.msra.mxu0 %v946
        %1016 = vmatpush.bf16.msra.mxu0 %v943
        %1017 = vmatpush.bf16.msra.mxu0 %v940
        %1018 = vmatpush.bf16.msra.mxu0 %v937
        %1019 = vmatmul.bf16.gmra.mxu0 %v814
        %v1020 = vpop.f32.mrf.mxu0
        %v1021 = vadd.f32 %v851, %v1020
        %v1022 = vpop.f32.mrf.mxu0
        %v1023 = vadd.f32 %v851, %v1022
        %1024 = vdwg.mxu0
        %v1025 = vld [vmem:[%s2] sm:$0x1]
        %v1026 = vld [vmem:[%s2 + $0x1] sm:$0x1]
        %v1027 = vld [vmem:[%s2 + $0x2] sm:$0x1]
        %v1028 = vld [vmem:[%s2 + $0x3] sm:$0x1]
        %v1033 = vperm.slane %v1025, 0
        %v1034 = vperm.slane %v1026, 0
        %v1035 = vperm.slane %v1027, 0
        %v1036 = vperm.slane %v1028, 0
        %v1041 = vmul.f32 %v1033, %v1007
        %v1042 = vmul.f32 %v1033, %v1009
        %v1043 = vmul.f32 %v1034, %v1007
        %v1044 = vmul.f32 %v1034, %v1009
        %v1045 = vmul.f32 %v1035, %v1007
        %v1046 = vmul.f32 %v1035, %v1009
        %v1047 = vmul.f32 %v1036, %v1007
        %v1048 = vmul.f32 %v1036, %v1009
        %v1049 = vmul.f32 %v1033, %v1021
        %v1050 = vmul.f32 %v1033, %v1023
        %v1051 = vmul.f32 %v1034, %v1021
        %v1052 = vmul.f32 %v1034, %v1023
        %v1053 = vmul.f32 %v1035, %v1021
        %v1054 = vmul.f32 %v1035, %v1023
        %v1055 = vmul.f32 %v1036, %v1021
        %v1056 = vmul.f32 %v1036, %v1023
        %v1057 = vpack.c.bf16 %v1042, %v1041
        %v1058 = vpack.c.bf16 %v1044, %v1043
        %v1059 = vpack.c.bf16 %v1046, %v1045
        %v1060 = vpack.c.bf16 %v1048, %v1047
        %v1061 = vpack.c.bf16 %v1050, %v1049
        %v1062 = vpack.c.bf16 %v1052, %v1051
        %v1063 = vpack.c.bf16 %v1054, %v1053
        %v1064 = vpack.c.bf16 %v1056, %v1055
        %v1065 = vpack.c.bf16 %v995, %v993
        %v1066 = vld [vmem:[%s1] sm:$0xff]
        %v1067 = vld [vmem:[%s1 + $0x8] sm:$0xff]
        %1068 = vmatpush.bf16.xpose.msra.mxu0 0
        %1069 = vmatpush.bf16.xpose.msra.mxu0 0
        %1070 = vmatpush.bf16.xpose.msra.mxu0 0
        %1071 = vmatpush.bf16.xpose.msra.mxu0 0
        %1072 = vmatpush.bf16.xpose.msra.mxu0 %v1060
        %1073 = vmatpush.bf16.xpose.msra.mxu0 %v1059
        %1074 = vmatpush.bf16.xpose.msra.mxu0 %v1058
        %1075 = vmatpush.bf16.xpose.msra.mxu0 %v1057
        %1076 = vmatmul.bf16.gmra.mxu0 %v1065
        %v1077 = vpop.f32.mrf.mxu0
        %v1078 = vadd.f32 %v1066, %v1077
        %v1079 = vpop.f32.mrf.mxu0
        %v1080 = vadd.f32 %v1067, %v1079
        %1081 = vdwg.mxu0
        %vm1082 = vcmask 523264
        %v1083 = vsel %vm1082, %v1078, -inf
        %1084 = vmax.xlane.f32.xlu0 %v1083
        %v1085 = vpop.xlane.xlu0 %1084
        %v1086 = vsel %vm1082, %v1080, -inf
        %1087 = vmax.xlane.f32.xlu0 %v1086
        %v1088 = vpop.xlane.xlu0 %1087
        %v1089 = vsub.f32 %v1078, %v1085
        %v1090 = vsub.f32 %v1080, %v1088
        %v1091 = vmul.f32 %v1089, 1.442695
        %v1092 = vpow.pop %v1091
        %v1093 = vmul.f32 %v1090, 1.442695
        %v1094 = vpow.pop %v1093
        %v1095 = vpack.c.bf16 %v1094, %v1092
        %v1097 = vsel %vm1082, %v1095, 0
        %1099 = vmatpush.bf16.msra.mxu0 0
        %1100 = vmatpush.bf16.msra.mxu0 0
        %1101 = vmatpush.bf16.msra.mxu0 0
        %1102 = vmatpush.bf16.msra.mxu0 0
        %1103 = vmatpush.bf16.msra.mxu0 %v1064
        %1104 = vmatpush.bf16.msra.mxu0 %v1063
        %1105 = vmatpush.bf16.msra.mxu0 %v1062
        %1106 = vmatpush.bf16.msra.mxu0 %v1061
        %1107 = vmatmul.bf16.gmra.mxu0 %v1097
        %v1108 = vpop.f32.mrf.mxu0
        %v1109 = vadd.f32 0.0, %v1108
        %v1110 = vpop.f32.mrf.mxu0
        %v1111 = vadd.f32 0.0, %v1110
        %1112 = vdwg.mxu0
        %v1113 = vld [vmem:[%s3] sm:$0xf]
        %v1114 = vld [vmem:[%s3 + $0x4] sm:$0xf]
        %v1115 = vld [vmem:[%s3 + $0x8] sm:$0xf]
        %v1116 = vld [vmem:[%s3 + $0xc] sm:$0xf]
        %v1117 = vld [vmem:[%s3 + $0x10] sm:$0xf]
        %v1118 = vld [vmem:[%s3 + $0x14] sm:$0xf]
        %v1119 = vld [vmem:[%s3 + $0x18] sm:$0xf]
        %v1120 = vld [vmem:[%s3 + $0x1c] sm:$0xf]
        %v1129 = vunpack.c.l.b16 %v1113
        %v1130 = vunpack.c.l.b16 %v1114
        %v1131 = vunpack.c.l.b16 %v1115
        %v1132 = vunpack.c.l.b16 %v1116
        %v1133 = vunpack.c.l.b16 %v1117
        %v1134 = vunpack.c.l.b16 %v1118
        %v1135 = vunpack.c.l.b16 %v1119
        %v1136 = vunpack.c.l.b16 %v1120
        %v1137 = vpack.c.b16 %v1130, %v1129
        %v1138 = vpack.c.b16 %v1132, %v1131
        %v1139 = vpack.c.b16 %v1134, %v1133
        %v1140 = vpack.c.b16 %v1136, %v1135
        %1145 = vmatpush.bf16.msra.mxu0 0
        %1146 = vmatpush.bf16.msra.mxu0 0
        %1147 = vmatpush.bf16.msra.mxu0 0
        %1148 = vmatpush.bf16.msra.mxu0 0
        %1149 = vmatpush.bf16.msra.mxu0 %v1140
        %1150 = vmatpush.bf16.msra.mxu0 %v1139
        %1151 = vmatpush.bf16.msra.mxu0 %v1138
        %1152 = vmatpush.bf16.msra.mxu0 %v1137
        %1153 = vmatmul.bf16.gmra.mxu0 %v1097
        %v1154 = vpop.f32.mrf.mxu0
        %v1155 = vadd.f32 0.0, %v1154
        %v1156 = vpop.f32.mrf.mxu0
        %v1157 = vadd.f32 0.0, %v1156
        %1158 = vdwg.mxu0
        %v1159 = vmax.f32 %v1155, 1e-20
        %v1160 = vmax.f32 %v1157, 1e-20
        %v1161 = vrcp.pop %v1159
        %v1162 = vrcp.pop %v1160
        %v1163 = vmul.f32 %v1109, %v1161
        %v1164 = vmul.f32 %v1111, %v1162
        %v1165 = vpack.c.bf16 %v1164, %v1163
        %v1166 = vld [vmem:[%s780] sm:$0xf]
        %v1167 = vld [vmem:[%s780 + $0x4] sm:$0xf]
        %v1168 = vld [vmem:[%s780 + $0x8] sm:$0xf]
        %v1169 = vld [vmem:[%s780 + $0xc] sm:$0xf]
        %v1170 = vld [vmem:[%s780 + $0x10] sm:$0xf]
        %v1171 = vld [vmem:[%s780 + $0x14] sm:$0xf]
        %v1172 = vld [vmem:[%s780 + $0x18] sm:$0xf]
        %v1173 = vld [vmem:[%s780 + $0x1c] sm:$0xf]
        %v1174 = vld [vmem:[%s780 + $0x20] sm:$0xf]
        %v1175 = vld [vmem:[%s780 + $0x24] sm:$0xf]
        %v1176 = vld [vmem:[%s780 + $0x28] sm:$0xf]
        %v1177 = vld [vmem:[%s780 + $0x2c] sm:$0xf]
        %v1178 = vld [vmem:[%s780 + $0x30] sm:$0xf]
        %v1179 = vld [vmem:[%s780 + $0x34] sm:$0xf]
        %v1180 = vld [vmem:[%s780 + $0x38] sm:$0xf]
        %v1181 = vld [vmem:[%s780 + $0x3c] sm:$0xf]
        %v1182 = vld [vmem:[%s783] sm:$0x1]
        %v1184 = vperm.slane %v1182, 0
        %v1202 = vunpack.c.l.b16 %v1166
        %v1203 = vunpack.c.l.b16 %v1167
        %v1204 = vunpack.c.l.b16 %v1168
        %v1205 = vunpack.c.l.b16 %v1169
        %v1206 = vunpack.c.l.b16 %v1170
        %v1207 = vunpack.c.l.b16 %v1171
        %v1208 = vunpack.c.l.b16 %v1172
        %v1209 = vunpack.c.l.b16 %v1173
        %v1210 = vunpack.c.l.b16 %v1174
        %v1211 = vunpack.c.l.b16 %v1175
        %v1212 = vunpack.c.l.b16 %v1176
        %v1213 = vunpack.c.l.b16 %v1177
        %v1214 = vunpack.c.l.b16 %v1178
        %v1215 = vunpack.c.l.b16 %v1179
        %v1216 = vunpack.c.l.b16 %v1180
        %v1217 = vunpack.c.l.b16 %v1181
        %v1218 = vpack.c.b16 %v1203, %v1202
        %v1219 = vpack.c.b16 %v1205, %v1204
        %v1220 = vpack.c.b16 %v1207, %v1206
        %v1221 = vpack.c.b16 %v1209, %v1208
        %v1222 = vpack.c.b16 %v1211, %v1210
        %v1223 = vpack.c.b16 %v1213, %v1212
        %v1224 = vpack.c.b16 %v1215, %v1214
        %v1225 = vpack.c.b16 %v1217, %v1216
        %1234 = vmatpush.bf16.msra.mxu0 %v1225
        %1235 = vmatpush.bf16.msra.mxu0 %v1224
        %1236 = vmatpush.bf16.msra.mxu0 %v1223
        %1237 = vmatpush.bf16.msra.mxu0 %v1222
        %1238 = vmatpush.bf16.msra.mxu0 %v1221
        %1239 = vmatpush.bf16.msra.mxu0 %v1220
        %1240 = vmatpush.bf16.msra.mxu0 %v1219
        %1241 = vmatpush.bf16.msra.mxu0 %v1218
        %1242 = vmatmul.bf16.gmra.mxu0 %v1165
        %v1243 = vpop.f32.mrf.mxu0
        %v1244 = vadd.f32 %v1184, %v1243
        %v1245 = vpop.f32.mrf.mxu0
        %v1246 = vadd.f32 %v1184, %v1245
        %1247 = vdwg.mxu0
        %v1248 = vadd.f32 %v812, %v1244
        %v1249 = vadd.f32 %v813, %v1246
        %v1250 = vld [vmem:[%s786] sm:$0x1]
        %v1251 = vld [vmem:[%s789] sm:$0x1]
        %1252 = vadd.xlane.f32.xlu0 %v1248
        %v1253 = vpop.xlane.xlu0 %1252
        %1254 = vadd.xlane.f32.xlu0 %v1249
        %v1255 = vpop.xlane.xlu0 %1254
        %v1256 = vrcp.pop 128.0
        %v1257 = vmul.f32 128.0, %v1256
        %v1258 = vsub.f32 1.0, %v1257
        %v1259 = vmul.f32 %v1256, %v1258
        %v1260 = vadd.f32 %v1256, %v1259
        %vm1261 = vweird.f32 %v1256
        %v1262 = vsel %vm1261, %v1256, %v1260
        %v1263 = vmul.f32 %v1253, %v1262
        %v1264 = vmul.f32 %v1255, %v1262
        %v1265 = vsub.f32 %v1248, %v1263
        %v1266 = vsub.f32 %v1249, %v1264
        %v1267 = vmul.f32 %v1265, %v1265
        %v1268 = vmul.f32 %v1266, %v1266
        %1269 = vadd.xlane.f32.xlu0 %v1267
        %v1270 = vpop.xlane.xlu0 %1269
        %1271 = vadd.xlane.f32.xlu0 %v1268
        %v1272 = vpop.xlane.xlu0 %1271
        %v1273 = vmul.f32 %v1270, %v1262
        %v1274 = vmul.f32 %v1272, %v1262
        %v1275 = vadd.f32 %v1273, 1e-05
        %v1276 = vadd.f32 %v1274, 1e-05
        %v1277 = vrsqrt.pop %v1275
        %v1278 = vmul.f32 %v1277, %v1275
        %v1279 = vmul.f32 %v1278, %v1277
        %v1280 = vmul.f32 0.5, %v1279
        %v1281 = vsub.f32 1.5, %v1280
        %v1282 = vmul.f32 %v1277, %v1281
        %vm1283 = vweird.f32 %v1275
        %vm1284 = vweird.f32 %v1277
        %vm1285 = vmor %vm1283, %vm1284
        %v1286 = vsel %vm1285, %v1277, %v1282
        %v1287 = vrsqrt.pop %v1276
        %v1288 = vmul.f32 %v1287, %v1276
        %v1289 = vmul.f32 %v1288, %v1287
        %v1290 = vmul.f32 0.5, %v1289
        %v1291 = vsub.f32 1.5, %v1290
        %v1292 = vmul.f32 %v1287, %v1291
        %vm1293 = vweird.f32 %v1276
        %vm1294 = vweird.f32 %v1287
        %vm1295 = vmor %vm1293, %vm1294
        %v1296 = vsel %vm1295, %v1287, %v1292
        %v1297 = vmul.f32 %v1265, %v1286
        %v1298 = vmul.f32 %v1266, %v1296
        %v1300 = vperm.slane %v1250, 0
        %v1302 = vmul.f32 %v1297, %v1300
        %v1303 = vmul.f32 %v1298, %v1300
        %v1305 = vperm.slane %v1251, 0
        %v1307 = vadd.f32 %v1302, %v1305
        %v1308 = vadd.f32 %v1303, %v1305
        %v1309 = vpack.c.bf16 %v1308, %v1307
        %v1310 = vld [vmem:[%s672] sm:$0xff]
        %v1311 = vld [vmem:[%s672 + $0x8] sm:$0xff]
        %v1312 = vld [vmem:[%s672 + $0x10] sm:$0xff]
        %v1313 = vld [vmem:[%s672 + $0x18] sm:$0xff]
        %v1314 = vld [vmem:[%s672 + $0x20] sm:$0xff]
        %v1315 = vld [vmem:[%s672 + $0x28] sm:$0xff]
        %v1316 = vld [vmem:[%s672 + $0x30] sm:$0xff]
        %v1317 = vld [vmem:[%s672 + $0x38] sm:$0xff]
        %v1318 = vld [vmem:[%s672 + $0x40] sm:$0xff]
        %v1319 = vld [vmem:[%s672 + $0x48] sm:$0xff]
        %v1320 = vld [vmem:[%s672 + $0x50] sm:$0xff]
        %v1321 = vld [vmem:[%s672 + $0x58] sm:$0xff]
        %v1322 = vld [vmem:[%s672 + $0x60] sm:$0xff]
        %v1323 = vld [vmem:[%s672 + $0x68] sm:$0xff]
        %v1324 = vld [vmem:[%s672 + $0x70] sm:$0xff]
        %v1325 = vld [vmem:[%s672 + $0x78] sm:$0xff]
        %v1326 = vld [vmem:[%s672 + $0x80] sm:$0xff]
        %v1327 = vld [vmem:[%s672 + $0x88] sm:$0xff]
        %v1328 = vld [vmem:[%s672 + $0x90] sm:$0xff]
        %v1329 = vld [vmem:[%s672 + $0x98] sm:$0xff]
        %v1330 = vld [vmem:[%s672 + $0xa0] sm:$0xff]
        %v1331 = vld [vmem:[%s672 + $0xa8] sm:$0xff]
        %v1332 = vld [vmem:[%s672 + $0xb0] sm:$0xff]
        %v1333 = vld [vmem:[%s672 + $0xb8] sm:$0xff]
        %v1334 = vld [vmem:[%s672 + $0xc0] sm:$0xff]
        %v1335 = vld [vmem:[%s672 + $0xc8] sm:$0xff]
        %v1336 = vld [vmem:[%s672 + $0xd0] sm:$0xff]
        %v1337 = vld [vmem:[%s672 + $0xd8] sm:$0xff]
        %v1338 = vld [vmem:[%s672 + $0xe0] sm:$0xff]
        %v1339 = vld [vmem:[%s672 + $0xe8] sm:$0xff]
        %v1340 = vld [vmem:[%s672 + $0xf0] sm:$0xff]
        %v1341 = vld [vmem:[%s672 + $0xf8] sm:$0xff]
        %v1342 = vld [vmem:[%s793] sm:$0xf]
        %v1344 = vperm.slane %v1342, 0
        %v1345 = vperm.slane %v1342, 1
        %v1346 = vperm.slane %v1342, 2
        %v1347 = vperm.slane %v1342, 3
        %v1384 = vunpack.c.l.b16 %v1310
        %v1385 = vunpack.c.h.b16 %v1310
        %v1386 = vunpack.c.l.b16 %v1311
        %v1387 = vunpack.c.h.b16 %v1311
        %v1388 = vunpack.c.l.b16 %v1312
        %v1389 = vunpack.c.h.b16 %v1312
        %v1390 = vunpack.c.l.b16 %v1313
        %v1391 = vunpack.c.h.b16 %v1313
        %v1392 = vunpack.c.l.b16 %v1314
        %v1393 = vunpack.c.h.b16 %v1314
        %v1394 = vunpack.c.l.b16 %v1315
        %v1395 = vunpack.c.h.b16 %v1315
        %v1396 = vunpack.c.l.b16 %v1316
        %v1397 = vunpack.c.h.b16 %v1316
        %v1398 = vunpack.c.l.b16 %v1317
        %v1399 = vunpack.c.h.b16 %v1317
        %v1400 = vunpack.c.l.b16 %v1318
        %v1401 = vunpack.c.h.b16 %v1318
        %v1402 = vunpack.c.l.b16 %v1319
        %v1403 = vunpack.c.h.b16 %v1319
        %v1404 = vunpack.c.l.b16 %v1320
        %v1405 = vunpack.c.h.b16 %v1320
        %v1406 = vunpack.c.l.b16 %v1321
        %v1407 = vunpack.c.h.b16 %v1321
        %v1408 = vunpack.c.l.b16 %v1322
        %v1409 = vunpack.c.h.b16 %v1322
        %v1410 = vunpack.c.l.b16 %v1323
        %v1411 = vunpack.c.h.b16 %v1323
        %v1412 = vunpack.c.l.b16 %v1324
        %v1413 = vunpack.c.h.b16 %v1324
        %v1414 = vunpack.c.l.b16 %v1325
        %v1415 = vunpack.c.h.b16 %v1325
        %v1416 = vunpack.c.l.b16 %v1326
        %v1417 = vunpack.c.h.b16 %v1326
        %v1418 = vunpack.c.l.b16 %v1327
        %v1419 = vunpack.c.h.b16 %v1327
        %v1420 = vunpack.c.l.b16 %v1328
        %v1421 = vunpack.c.h.b16 %v1328
        %v1422 = vunpack.c.l.b16 %v1329
        %v1423 = vunpack.c.h.b16 %v1329
        %v1424 = vunpack.c.l.b16 %v1330
        %v1425 = vunpack.c.h.b16 %v1330
        %v1426 = vunpack.c.l.b16 %v1331
        %v1427 = vunpack.c.h.b16 %v1331
        %v1428 = vunpack.c.l.b16 %v1332
        %v1429 = vunpack.c.h.b16 %v1332
        %v1430 = vunpack.c.l.b16 %v1333
        %v1431 = vunpack.c.h.b16 %v1333
        %v1432 = vunpack.c.l.b16 %v1334
        %v1433 = vunpack.c.h.b16 %v1334
        %v1434 = vunpack.c.l.b16 %v1335
        %v1435 = vunpack.c.h.b16 %v1335
        %v1436 = vunpack.c.l.b16 %v1336
        %v1437 = vunpack.c.h.b16 %v1336
        %v1438 = vunpack.c.l.b16 %v1337
        %v1439 = vunpack.c.h.b16 %v1337
        %v1440 = vunpack.c.l.b16 %v1338
        %v1441 = vunpack.c.h.b16 %v1338
        %v1442 = vunpack.c.l.b16 %v1339
        %v1443 = vunpack.c.h.b16 %v1339
        %v1444 = vunpack.c.l.b16 %v1340
        %v1445 = vunpack.c.h.b16 %v1340
        %v1446 = vunpack.c.l.b16 %v1341
        %v1447 = vunpack.c.h.b16 %v1341
        %v1448 = vpack.c.b16 %v1388, %v1384
        %v1449 = vpack.c.b16 %v1389, %v1385
        %v1450 = vpack.c.b16 %v1390, %v1386
        %v1451 = vpack.c.b16 %v1391, %v1387
        %v1452 = vpack.c.b16 %v1396, %v1392
        %v1453 = vpack.c.b16 %v1397, %v1393
        %v1454 = vpack.c.b16 %v1398, %v1394
        %v1455 = vpack.c.b16 %v1399, %v1395
        %v1456 = vpack.c.b16 %v1404, %v1400
        %v1457 = vpack.c.b16 %v1405, %v1401
        %v1458 = vpack.c.b16 %v1406, %v1402
        %v1459 = vpack.c.b16 %v1407, %v1403
        %v1460 = vpack.c.b16 %v1412, %v1408
        %v1461 = vpack.c.b16 %v1413, %v1409
        %v1462 = vpack.c.b16 %v1414, %v1410
        %v1463 = vpack.c.b16 %v1415, %v1411
        %v1464 = vpack.c.b16 %v1420, %v1416
        %v1465 = vpack.c.b16 %v1421, %v1417
        %v1466 = vpack.c.b16 %v1422, %v1418
        %v1467 = vpack.c.b16 %v1423, %v1419
        %v1468 = vpack.c.b16 %v1428, %v1424
        %v1469 = vpack.c.b16 %v1429, %v1425
        %v1470 = vpack.c.b16 %v1430, %v1426
        %v1471 = vpack.c.b16 %v1431, %v1427
        %v1472 = vpack.c.b16 %v1436, %v1432
        %v1473 = vpack.c.b16 %v1437, %v1433
        %v1474 = vpack.c.b16 %v1438, %v1434
        %v1475 = vpack.c.b16 %v1439, %v1435
        %v1476 = vpack.c.b16 %v1444, %v1440
        %v1477 = vpack.c.b16 %v1445, %v1441
        %v1478 = vpack.c.b16 %v1446, %v1442
        %v1479 = vpack.c.b16 %v1447, %v1443
        %1512 = vmatpush.bf16.msra.mxu0 %v1476
        %1513 = vmatpush.bf16.msra.mxu0 %v1472
        %1514 = vmatpush.bf16.msra.mxu0 %v1468
        %1515 = vmatpush.bf16.msra.mxu0 %v1464
        %1516 = vmatpush.bf16.msra.mxu0 %v1460
        %1517 = vmatpush.bf16.msra.mxu0 %v1456
        %1518 = vmatpush.bf16.msra.mxu0 %v1452
        %1519 = vmatpush.bf16.msra.mxu0 %v1448
        %1520 = vmatmul.bf16.gmra.mxu0 %v1309
        %v1521 = vpop.f32.mrf.mxu0
        %v1522 = vadd.f32 %v1344, %v1521
        %v1523 = vpop.f32.mrf.mxu0
        %v1524 = vadd.f32 %v1344, %v1523
        %1525 = vdwg.mxu0
        %1526 = vmatpush.bf16.msra.mxu0 %v1477
        %1527 = vmatpush.bf16.msra.mxu0 %v1473
        %1528 = vmatpush.bf16.msra.mxu0 %v1469
        %1529 = vmatpush.bf16.msra.mxu0 %v1465
        %1530 = vmatpush.bf16.msra.mxu0 %v1461
        %1531 = vmatpush.bf16.msra.mxu0 %v1457
        %1532 = vmatpush.bf16.msra.mxu0 %v1453
        %1533 = vmatpush.bf16.msra.mxu0 %v1449
        %1534 = vmatmul.bf16.gmra.mxu0 %v1309
        %v1535 = vpop.f32.mrf.mxu0
        %v1536 = vadd.f32 %v1345, %v1535
        %v1537 = vpop.f32.mrf.mxu0
        %v1538 = vadd.f32 %v1345, %v1537
        %1539 = vdwg.mxu0
        %1540 = vmatpush.bf16.msra.mxu0 %v1478
        %1541 = vmatpush.bf16.msra.mxu0 %v1474
        %1542 = vmatpush.bf16.msra.mxu0 %v1470
        %1543 = vmatpush.bf16.msra.mxu0 %v1466
        %1544 = vmatpush.bf16.msra.mxu0 %v1462
        %1545 = vmatpush.bf16.msra.mxu0 %v1458
        %1546 = vmatpush.bf16.msra.mxu0 %v1454
        %1547 = vmatpush.bf16.msra.mxu0 %v1450
        %1548 = vmatmul.bf16.gmra.mxu0 %v1309
        %v1549 = vpop.f32.mrf.mxu0
        %v1550 = vadd.f32 %v1346, %v1549
        %v1551 = vpop.f32.mrf.mxu0
        %v1552 = vadd.f32 %v1346, %v1551
        %1553 = vdwg.mxu0
        %1554 = vmatpush.bf16.msra.mxu0 %v1479
        %1555 = vmatpush.bf16.msra.mxu0 %v1475
        %1556 = vmatpush.bf16.msra.mxu0 %v1471
        %1557 = vmatpush.bf16.msra.mxu0 %v1467
        %1558 = vmatpush.bf16.msra.mxu0 %v1463
        %1559 = vmatpush.bf16.msra.mxu0 %v1459
        %1560 = vmatpush.bf16.msra.mxu0 %v1455
        %1561 = vmatpush.bf16.msra.mxu0 %v1451
        %1562 = vmatmul.bf16.gmra.mxu0 %v1309
        %v1563 = vpop.f32.mrf.mxu0
        %v1564 = vadd.f32 %v1347, %v1563
        %v1565 = vpop.f32.mrf.mxu0
        %v1566 = vadd.f32 %v1347, %v1565
        %1567 = vdwg.mxu0
        %v1568 = vmax.f32 %v1522, 0.0
        %v1569 = vmax.f32 %v1536, 0.0
        %v1570 = vmax.f32 %v1550, 0.0
        %v1571 = vmax.f32 %v1564, 0.0
        %v1572 = vmax.f32 %v1524, 0.0
        %v1573 = vmax.f32 %v1538, 0.0
        %v1574 = vmax.f32 %v1552, 0.0
        %v1575 = vmax.f32 %v1566, 0.0
        %v1576 = vpack.c.bf16 %v1572, %v1568
        %v1577 = vpack.c.bf16 %v1573, %v1569
        %v1578 = vpack.c.bf16 %v1574, %v1570
        %v1579 = vpack.c.bf16 %v1575, %v1571
        %v1580 = vld [vmem:[%s682] sm:$0xf]
        %v1581 = vld [vmem:[%s682 + $0x4] sm:$0xf]
        %v1582 = vld [vmem:[%s682 + $0x8] sm:$0xf]
        %v1583 = vld [vmem:[%s682 + $0xc] sm:$0xf]
        %v1584 = vld [vmem:[%s682 + $0x10] sm:$0xf]
        %v1585 = vld [vmem:[%s682 + $0x14] sm:$0xf]
        %v1586 = vld [vmem:[%s682 + $0x18] sm:$0xf]
        %v1587 = vld [vmem:[%s682 + $0x1c] sm:$0xf]
        %v1588 = vld [vmem:[%s682 + $0x20] sm:$0xf]
        %v1589 = vld [vmem:[%s682 + $0x24] sm:$0xf]
        %v1590 = vld [vmem:[%s682 + $0x28] sm:$0xf]
        %v1591 = vld [vmem:[%s682 + $0x2c] sm:$0xf]
        %v1592 = vld [vmem:[%s682 + $0x30] sm:$0xf]
        %v1593 = vld [vmem:[%s682 + $0x34] sm:$0xf]
        %v1594 = vld [vmem:[%s682 + $0x38] sm:$0xf]
        %v1595 = vld [vmem:[%s682 + $0x3c] sm:$0xf]
        %v1596 = vld [vmem:[%s682 + $0x40] sm:$0xf]
        %v1597 = vld [vmem:[%s682 + $0x44] sm:$0xf]
        %v1598 = vld [vmem:[%s682 + $0x48] sm:$0xf]
        %v1599 = vld [vmem:[%s682 + $0x4c] sm:$0xf]
        %v1600 = vld [vmem:[%s682 + $0x50] sm:$0xf]
        %v1601 = vld [vmem:[%s682 + $0x54] sm:$0xf]
        %v1602 = vld [vmem:[%s682 + $0x58] sm:$0xf]
        %v1603 = vld [vmem:[%s682 + $0x5c] sm:$0xf]
        %v1604 = vld [vmem:[%s682 + $0x60] sm:$0xf]
        %v1605 = vld [vmem:[%s682 + $0x64] sm:$0xf]
        %v1606 = vld [vmem:[%s682 + $0x68] sm:$0xf]
        %v1607 = vld [vmem:[%s682 + $0x6c] sm:$0xf]
        %v1608 = vld [vmem:[%s682 + $0x70] sm:$0xf]
        %v1609 = vld [vmem:[%s682 + $0x74] sm:$0xf]
        %v1610 = vld [vmem:[%s682 + $0x78] sm:$0xf]
        %v1611 = vld [vmem:[%s682 + $0x7c] sm:$0xf]
        %v1612 = vld [vmem:[%s682 + $0x80] sm:$0xf]
        %v1613 = vld [vmem:[%s682 + $0x84] sm:$0xf]
        %v1614 = vld [vmem:[%s682 + $0x88] sm:$0xf]
        %v1615 = vld [vmem:[%s682 + $0x8c] sm:$0xf]
        %v1616 = vld [vmem:[%s682 + $0x90] sm:$0xf]
        %v1617 = vld [vmem:[%s682 + $0x94] sm:$0xf]
        %v1618 = vld [vmem:[%s682 + $0x98] sm:$0xf]
        %v1619 = vld [vmem:[%s682 + $0x9c] sm:$0xf]
        %v1620 = vld [vmem:[%s682 + $0xa0] sm:$0xf]
        %v1621 = vld [vmem:[%s682 + $0xa4] sm:$0xf]
        %v1622 = vld [vmem:[%s682 + $0xa8] sm:$0xf]
        %v1623 = vld [vmem:[%s682 + $0xac] sm:$0xf]
        %v1624 = vld [vmem:[%s682 + $0xb0] sm:$0xf]
        %v1625 = vld [vmem:[%s682 + $0xb4] sm:$0xf]
        %v1626 = vld [vmem:[%s682 + $0xb8] sm:$0xf]
        %v1627 = vld [vmem:[%s682 + $0xbc] sm:$0xf]
        %v1628 = vld [vmem:[%s682 + $0xc0] sm:$0xf]
        %v1629 = vld [vmem:[%s682 + $0xc4] sm:$0xf]
        %v1630 = vld [vmem:[%s682 + $0xc8] sm:$0xf]
        %v1631 = vld [vmem:[%s682 + $0xcc] sm:$0xf]
        %v1632 = vld [vmem:[%s682 + $0xd0] sm:$0xf]
        %v1633 = vld [vmem:[%s682 + $0xd4] sm:$0xf]
        %v1634 = vld [vmem:[%s682 + $0xd8] sm:$0xf]
        %v1635 = vld [vmem:[%s682 + $0xdc] sm:$0xf]
        %v1636 = vld [vmem:[%s682 + $0xe0] sm:$0xf]
        %v1637 = vld [vmem:[%s682 + $0xe4] sm:$0xf]
        %v1638 = vld [vmem:[%s682 + $0xe8] sm:$0xf]
        %v1639 = vld [vmem:[%s682 + $0xec] sm:$0xf]
        %v1640 = vld [vmem:[%s682 + $0xf0] sm:$0xf]
        %v1641 = vld [vmem:[%s682 + $0xf4] sm:$0xf]
        %v1642 = vld [vmem:[%s682 + $0xf8] sm:$0xf]
        %v1643 = vld [vmem:[%s682 + $0xfc] sm:$0xf]
        %v1644 = vld [vmem:[%s796] sm:$0x1]
        %v1646 = vperm.slane %v1644, 0
        %v1712 = vunpack.c.l.b16 %v1580
        %v1713 = vunpack.c.l.b16 %v1581
        %v1714 = vunpack.c.l.b16 %v1582
        %v1715 = vunpack.c.l.b16 %v1583
        %v1716 = vunpack.c.l.b16 %v1584
        %v1717 = vunpack.c.l.b16 %v1585
        %v1718 = vunpack.c.l.b16 %v1586
        %v1719 = vunpack.c.l.b16 %v1587
        %v1720 = vunpack.c.l.b16 %v1588
        %v1721 = vunpack.c.l.b16 %v1589
        %v1722 = vunpack.c.l.b16 %v1590
        %v1723 = vunpack.c.l.b16 %v1591
        %v1724 = vunpack.c.l.b16 %v1592
        %v1725 = vunpack.c.l.b16 %v1593
        %v1726 = vunpack.c.l.b16 %v1594
        %v1727 = vunpack.c.l.b16 %v1595
        %v1728 = vunpack.c.l.b16 %v1596
        %v1729 = vunpack.c.l.b16 %v1597
        %v1730 = vunpack.c.l.b16 %v1598
        %v1731 = vunpack.c.l.b16 %v1599
        %v1732 = vunpack.c.l.b16 %v1600
        %v1733 = vunpack.c.l.b16 %v1601
        %v1734 = vunpack.c.l.b16 %v1602
        %v1735 = vunpack.c.l.b16 %v1603
        %v1736 = vunpack.c.l.b16 %v1604
        %v1737 = vunpack.c.l.b16 %v1605
        %v1738 = vunpack.c.l.b16 %v1606
        %v1739 = vunpack.c.l.b16 %v1607
        %v1740 = vunpack.c.l.b16 %v1608
        %v1741 = vunpack.c.l.b16 %v1609
        %v1742 = vunpack.c.l.b16 %v1610
        %v1743 = vunpack.c.l.b16 %v1611
        %v1744 = vunpack.c.l.b16 %v1612
        %v1745 = vunpack.c.l.b16 %v1613
        %v1746 = vunpack.c.l.b16 %v1614
        %v1747 = vunpack.c.l.b16 %v1615
        %v1748 = vunpack.c.l.b16 %v1616
        %v1749 = vunpack.c.l.b16 %v1617
        %v1750 = vunpack.c.l.b16 %v1618
        %v1751 = vunpack.c.l.b16 %v1619
        %v1752 = vunpack.c.l.b16 %v1620
        %v1753 = vunpack.c.l.b16 %v1621
        %v1754 = vunpack.c.l.b16 %v1622
        %v1755 = vunpack.c.l.b16 %v1623
        %v1756 = vunpack.c.l.b16 %v1624
        %v1757 = vunpack.c.l.b16 %v1625
        %v1758 = vunpack.c.l.b16 %v1626
        %v1759 = vunpack.c.l.b16 %v1627
        %v1760 = vunpack.c.l.b16 %v1628
        %v1761 = vunpack.c.l.b16 %v1629
        %v1762 = vunpack.c.l.b16 %v1630
        %v1763 = vunpack.c.l.b16 %v1631
        %v1764 = vunpack.c.l.b16 %v1632
        %v1765 = vunpack.c.l.b16 %v1633
        %v1766 = vunpack.c.l.b16 %v1634
        %v1767 = vunpack.c.l.b16 %v1635
        %v1768 = vunpack.c.l.b16 %v1636
        %v1769 = vunpack.c.l.b16 %v1637
        %v1770 = vunpack.c.l.b16 %v1638
        %v1771 = vunpack.c.l.b16 %v1639
        %v1772 = vunpack.c.l.b16 %v1640
        %v1773 = vunpack.c.l.b16 %v1641
        %v1774 = vunpack.c.l.b16 %v1642
        %v1775 = vunpack.c.l.b16 %v1643
        %v1776 = vpack.c.b16 %v1713, %v1712
        %v1777 = vpack.c.b16 %v1715, %v1714
        %v1778 = vpack.c.b16 %v1717, %v1716
        %v1779 = vpack.c.b16 %v1719, %v1718
        %v1780 = vpack.c.b16 %v1721, %v1720
        %v1781 = vpack.c.b16 %v1723, %v1722
        %v1782 = vpack.c.b16 %v1725, %v1724
        %v1783 = vpack.c.b16 %v1727, %v1726
        %v1784 = vpack.c.b16 %v1729, %v1728
        %v1785 = vpack.c.b16 %v1731, %v1730
        %v1786 = vpack.c.b16 %v1733, %v1732
        %v1787 = vpack.c.b16 %v1735, %v1734
        %v1788 = vpack.c.b16 %v1737, %v1736
        %v1789 = vpack.c.b16 %v1739, %v1738
        %v1790 = vpack.c.b16 %v1741, %v1740
        %v1791 = vpack.c.b16 %v1743, %v1742
        %v1792 = vpack.c.b16 %v1745, %v1744
        %v1793 = vpack.c.b16 %v1747, %v1746
        %v1794 = vpack.c.b16 %v1749, %v1748
        %v1795 = vpack.c.b16 %v1751, %v1750
        %v1796 = vpack.c.b16 %v1753, %v1752
        %v1797 = vpack.c.b16 %v1755, %v1754
        %v1798 = vpack.c.b16 %v1757, %v1756
        %v1799 = vpack.c.b16 %v1759, %v1758
        %v1800 = vpack.c.b16 %v1761, %v1760
        %v1801 = vpack.c.b16 %v1763, %v1762
        %v1802 = vpack.c.b16 %v1765, %v1764
        %v1803 = vpack.c.b16 %v1767, %v1766
        %v1804 = vpack.c.b16 %v1769, %v1768
        %v1805 = vpack.c.b16 %v1771, %v1770
        %v1806 = vpack.c.b16 %v1773, %v1772
        %v1807 = vpack.c.b16 %v1775, %v1774
        %1840 = vmatpush.bf16.msra.mxu0 %v1783
        %1841 = vmatpush.bf16.msra.mxu0 %v1782
        %1842 = vmatpush.bf16.msra.mxu0 %v1781
        %1843 = vmatpush.bf16.msra.mxu0 %v1780
        %1844 = vmatpush.bf16.msra.mxu0 %v1779
        %1845 = vmatpush.bf16.msra.mxu0 %v1778
        %1846 = vmatpush.bf16.msra.mxu0 %v1777
        %1847 = vmatpush.bf16.msra.mxu0 %v1776
        %1848 = vmatmul.bf16.gmra.mxu0 %v1576
        %v1849 = vpop.f32.mrf.mxu0
        %v1850 = vadd.f32 %v1646, %v1849
        %v1851 = vpop.f32.mrf.mxu0
        %v1852 = vadd.f32 %v1646, %v1851
        %1853 = vdwg.mxu0
        %1854 = vmatpush.bf16.msra.mxu0 %v1791
        %1855 = vmatpush.bf16.msra.mxu0 %v1790
        %1856 = vmatpush.bf16.msra.mxu0 %v1789
        %1857 = vmatpush.bf16.msra.mxu0 %v1788
        %1858 = vmatpush.bf16.msra.mxu0 %v1787
        %1859 = vmatpush.bf16.msra.mxu0 %v1786
        %1860 = vmatpush.bf16.msra.mxu0 %v1785
        %1861 = vmatpush.bf16.msra.mxu0 %v1784
        %1862 = vmatmul.bf16.gmra.mxu0 %v1577
        %v1863 = vpop.f32.mrf.mxu0
        %v1864 = vadd.f32 %v1850, %v1863
        %v1865 = vpop.f32.mrf.mxu0
        %v1866 = vadd.f32 %v1852, %v1865
        %1867 = vdwg.mxu0
        %1868 = vmatpush.bf16.msra.mxu0 %v1799
        %1869 = vmatpush.bf16.msra.mxu0 %v1798
        %1870 = vmatpush.bf16.msra.mxu0 %v1797
        %1871 = vmatpush.bf16.msra.mxu0 %v1796
        %1872 = vmatpush.bf16.msra.mxu0 %v1795
        %1873 = vmatpush.bf16.msra.mxu0 %v1794
        %1874 = vmatpush.bf16.msra.mxu0 %v1793
        %1875 = vmatpush.bf16.msra.mxu0 %v1792
        %1876 = vmatmul.bf16.gmra.mxu0 %v1578
        %v1877 = vpop.f32.mrf.mxu0
        %v1878 = vadd.f32 %v1864, %v1877
        %v1879 = vpop.f32.mrf.mxu0
        %v1880 = vadd.f32 %v1866, %v1879
        %1881 = vdwg.mxu0
        %1882 = vmatpush.bf16.msra.mxu0 %v1807
        %1883 = vmatpush.bf16.msra.mxu0 %v1806
        %1884 = vmatpush.bf16.msra.mxu0 %v1805
        %1885 = vmatpush.bf16.msra.mxu0 %v1804
        %1886 = vmatpush.bf16.msra.mxu0 %v1803
        %1887 = vmatpush.bf16.msra.mxu0 %v1802
        %1888 = vmatpush.bf16.msra.mxu0 %v1801
        %1889 = vmatpush.bf16.msra.mxu0 %v1800
        %1890 = vmatmul.bf16.gmra.mxu0 %v1579
        %v1891 = vpop.f32.mrf.mxu0
        %v1892 = vadd.f32 %v1878, %v1891
        %v1893 = vpop.f32.mrf.mxu0
        %v1894 = vadd.f32 %v1880, %v1893
        %1895 = vdwg.mxu0
        %v1896 = vadd.f32 %v1307, %v1892
        %v1897 = vadd.f32 %v1308, %v1894
        %v1898 = vld [vmem:[%s799] sm:$0x1]
        %v1899 = vld [vmem:[%s802] sm:$0x1]
        %1900 = vadd.xlane.f32.xlu0 %v1896
        %v1901 = vpop.xlane.xlu0 %1900
        %1902 = vadd.xlane.f32.xlu0 %v1897
        %v1903 = vpop.xlane.xlu0 %1902
        %v1904 = vmul.f32 %v1901, %v1262
        %v1905 = vmul.f32 %v1903, %v1262
        %v1906 = vsub.f32 %v1896, %v1904
        %v1907 = vsub.f32 %v1897, %v1905
        %v1908 = vmul.f32 %v1906, %v1906
        %v1909 = vmul.f32 %v1907, %v1907
        %1910 = vadd.xlane.f32.xlu0 %v1908
        %v1911 = vpop.xlane.xlu0 %1910
        %1912 = vadd.xlane.f32.xlu0 %v1909
        %v1913 = vpop.xlane.xlu0 %1912
        %v1914 = vmul.f32 %v1911, %v1262
        %v1915 = vmul.f32 %v1913, %v1262
        %v1916 = vadd.f32 %v1914, 1e-05
        %v1917 = vadd.f32 %v1915, 1e-05
        %v1918 = vrsqrt.pop %v1916
        %v1919 = vmul.f32 %v1918, %v1916
        %v1920 = vmul.f32 %v1919, %v1918
        %v1921 = vmul.f32 0.5, %v1920
        %v1922 = vsub.f32 1.5, %v1921
        %v1923 = vmul.f32 %v1918, %v1922
        %vm1924 = vweird.f32 %v1916
        %vm1925 = vweird.f32 %v1918
        %vm1926 = vmor %vm1924, %vm1925
        %v1927 = vsel %vm1926, %v1918, %v1923
        %v1928 = vrsqrt.pop %v1917
        %v1929 = vmul.f32 %v1928, %v1917
        %v1930 = vmul.f32 %v1929, %v1928
        %v1931 = vmul.f32 0.5, %v1930
        %v1932 = vsub.f32 1.5, %v1931
        %v1933 = vmul.f32 %v1928, %v1932
        %vm1934 = vweird.f32 %v1917
        %vm1935 = vweird.f32 %v1928
        %vm1936 = vmor %vm1934, %vm1935
        %v1937 = vsel %vm1936, %v1928, %v1933
        %v1938 = vmul.f32 %v1906, %v1927
        %v1939 = vmul.f32 %v1907, %v1937
        %v1941 = vperm.slane %v1898, 0
        %v1943 = vmul.f32 %v1938, %v1941
        %v1944 = vmul.f32 %v1939, %v1941
        %v1946 = vperm.slane %v1899, 0
        %v1948 = vadd.f32 %v1943, %v1946
        %v1949 = vadd.f32 %v1944, %v1946
        %1950 = vst [vmem:[#allocation2] sm:$0xff] %v1948
        %1951 = vst [vmem:[#allocation2 + $0x8] sm:$0xff] %v1949
        %p1952 = scmp.eq.s32.totalorder %s36, 1
        // Predicated region
        $region109: #{small_transformer_lm_forward.1} parent=91 // pred_check
          %p1953 = pneg %p1952
        $region110: #{small_transformer_lm_forward.1} parent=91 // pred_check_branch
          %1955 = sbr.rel (%p1953) target = $region112
        $region111: #{small_transformer_lm_forward.1} parent=91 // pred_region
          %v1956 = vpack.c.bf16 %v1949, %v1948
          %v1957 = vld [vmem:[%s16] sm:$0xf]
          %v1958 = vld [vmem:[%s16 + $0x4] sm:$0xf]
          %v1959 = vld [vmem:[%s16 + $0x8] sm:$0xf]
          %v1960 = vld [vmem:[%s16 + $0xc] sm:$0xf]
          %v1961 = vld [vmem:[%s16 + $0x10] sm:$0xf]
          %v1962 = vld [vmem:[%s16 + $0x14] sm:$0xf]
          %v1963 = vld [vmem:[%s16 + $0x18] sm:$0xf]
          %v1964 = vld [vmem:[%s16 + $0x1c] sm:$0xf]
          %v1965 = vld [vmem:[%s16 + $0x20] sm:$0xf]
          %v1966 = vld [vmem:[%s16 + $0x24] sm:$0xf]
          %v1967 = vld [vmem:[%s16 + $0x28] sm:$0xf]
          %v1968 = vld [vmem:[%s16 + $0x2c] sm:$0xf]
          %v1969 = vld [vmem:[%s16 + $0x30] sm:$0xf]
          %v1970 = vld [vmem:[%s16 + $0x34] sm:$0xf]
          %v1971 = vld [vmem:[%s16 + $0x38] sm:$0xf]
          %v1972 = vld [vmem:[%s16 + $0x3c] sm:$0xf]
          %v1973 = vld [vmem:[%s17] sm:$0x1]
          %v1975 = vperm.slane %v1973, 0
          %v1993 = vunpack.c.l.b16 %v1957
          %v1994 = vunpack.c.l.b16 %v1958
          %v1995 = vunpack.c.l.b16 %v1959
          %v1996 = vunpack.c.l.b16 %v1960
          %v1997 = vunpack.c.l.b16 %v1961
          %v1998 = vunpack.c.l.b16 %v1962
          %v1999 = vunpack.c.l.b16 %v1963
          %v2000 = vunpack.c.l.b16 %v1964
          %v2001 = vunpack.c.l.b16 %v1965
          %v2002 = vunpack.c.l.b16 %v1966
          %v2003 = vunpack.c.l.b16 %v1967
          %v2004 = vunpack.c.l.b16 %v1968
          %v2005 = vunpack.c.l.b16 %v1969
          %v2006 = vunpack.c.l.b16 %v1970
          %v2007 = vunpack.c.l.b16 %v1971
          %v2008 = vunpack.c.l.b16 %v1972
          %v2009 = vpack.c.b16 %v1994, %v1993
          %v2010 = vpack.c.b16 %v1996, %v1995
          %v2011 = vpack.c.b16 %v1998, %v1997
          %v2012 = vpack.c.b16 %v2000, %v1999
          %v2013 = vpack.c.b16 %v2002, %v2001
          %v2014 = vpack.c.b16 %v2004, %v2003
          %v2015 = vpack.c.b16 %v2006, %v2005
          %v2016 = vpack.c.b16 %v2008, %v2007
          %2025 = vmatpush.bf16.msra.mxu0 %v2016
          %2026 = vmatpush.bf16.msra.mxu0 %v2015
          %2027 = vmatpush.bf16.msra.mxu0 %v2014
          %2028 = vmatpush.bf16.msra.mxu0 %v2013
          %2029 = vmatpush.bf16.msra.mxu0 %v2012
          %2030 = vmatpush.bf16.msra.mxu0 %v2011
          %2031 = vmatpush.bf16.msra.mxu0 %v2010
          %2032 = vmatpush.bf16.msra.mxu0 %v2009
          %2033 = vmatmul.bf16.gmra.mxu0 %v1956
          %v2034 = vpop.f32.mrf.mxu0
          %v2035 = vadd.f32 %v1975, %v2034
          %v2036 = vpop.f32.mrf.mxu0
          %v2037 = vadd.f32 %v1975, %v2036
          %2038 = vdwg.mxu0
          %2039 = vst [vmem:[#allocation9] sm:$0xff] %v2035
          %2040 = vst [vmem:[#allocation9 + $0x8] sm:$0xff] %v2037
        $region112: #{small_transformer_lm_forward.1} parent=91 // pred_fallthru
          _
        // Predicated region
        $region113: #{small_transformer_lm_forward.1} parent=91 // pred_check
          %p2041 = pneg %p487
        $region114: #{small_transformer_lm_forward.1} parent=91 // pred_check_branch
          %2043 = sbr.rel (%p2041) target = $region116
        $region115: #{small_transformer_lm_forward.1} parent=91 // pred_region
          %2045 = vsyncadd [#allocation5], 0
          %s2046 = sshll.u32 [#allocation9], 4
          %s2047 = int_to_ptr.vmem [resolvable:$true] %s2046
          %s2048 = sshll.u32 %s18, 4
          %s2049 = int_to_ptr.hbm [resolvable:$true] %s2048
          %2054 = dma.vmem_to_hbm [thread:$0]  %s2047, 256, %s2049, [#allocation5], 128, 128, 8
        $region116: #{small_transformer_lm_forward.1} parent=91 // pred_fallthru
          _
        // Predicated region
        $region117: #{small_transformer_lm_forward.1} parent=91 // pred_check
          %p2055 = pneg %p487
        $region118: #{small_transformer_lm_forward.1} parent=91 // pred_check_branch
          %2057 = sbr.rel (%p2055) target = $region120
        $region119: #{small_transformer_lm_forward.1} parent=91 // pred_region
          %2059 = dma.done [#allocation5], 256
        $region120: #{small_transformer_lm_forward.1} parent=91 // pred_fallthru
          _
      $region92: #{small_transformer_lm_forward.1} parent=5 // pred_fallthru
        _
      %p2060 = scmp.le.s32.totalorder 2, %s31
      // Predicated region
      $region121: #{small_transformer_lm_forward.1} parent=5 // pred_check
        %p2061 = pneg %p2060
      $region122: #{small_transformer_lm_forward.1} parent=5 // pred_check_branch
        %2063 = sbr.rel (%p2061) target = $region124
      $region123: #{small_transformer_lm_forward.1} parent=5 // pred_region
        %s2064 = ssub.s32 %s31, 2
      $region124: #{small_transformer_lm_forward.1} parent=5 // pred_fallthru
        _
    $region6: #{small_transformer_lm_forward.1} parent=1 // loop_footer
      %s35 = sadd.s32 1, %s31
    $region7: #{small_transformer_lm_forward.1} parent=1 // loop_footer_branch
      %30 = sbr.rel target = $region3
    $region8: #{small_transformer_lm_forward.1} parent=1 // loop_exit
      _
    %2065 = vsyncpa [#allocation4], 1
    %s2066 = scalar_lea.sflag [#allocation4], 1
    %2067 = vsyncpa %s2066, 1
    %2068 = vsyncpa [#allocation7], 1
    %s2069 = scalar_lea.sflag [#allocation7], 1
    %2070 = vsyncpa %s2069, 1
    %2071 = vsyncpa [#allocation5], 1
    %s2072 = scalar_lea.sflag [#allocation5], 1
    %2073 = vsyncpa %s2072, 1

</llo_original>
